<compile_context>
chip_gen: v7x
topology: tpu7x:2x2x1
jax: 0.10.0
libtpu: 0.0.40
codegen_flags: <defaults>
</compile_context>

<pallas_src>
import jax
import jax.numpy as jnp
from jax.experimental import pallas as pl
from jax.experimental.pallas import tpu as pltpu

BN_EPS = 1e-5


def _projector_kernel(x_ref, w1_ref, gamma_ref, beta_ref, w2_ref, b2_ref,
                      o_ref, acc_ref):
    k = pl.program_id(0)

    @pl.when(k == 0)
    def _():
        acc_ref[...] = jnp.zeros_like(acc_ref)

    # ---- Linear 1 for this H block: bf16 operands, f32 MXU accumulation ----
    # x is cast to bf16 here (in VMEM), never copied to HBM in bf16.
    x_bf = x_ref[...].astype(jnp.bfloat16)
    h = jnp.dot(x_bf, w1_ref[...], preferred_element_type=jnp.float32)  # (B, TH) f32

    # ---- BatchNorm1d training-mode stats, single pass over h ----
    # Per-feature (column) stats over the batch; var = E[h^2] - mean^2 (biased).
    inv_b = 1.0 / h.shape[0]
    mean = jnp.sum(h, axis=0, keepdims=True) * inv_b                  # (1, TH)
    meansq = jnp.sum(h * h, axis=0, keepdims=True) * inv_b            # (1, TH)
    var = jnp.maximum(meansq - mean * mean, 0.0)
    inv_std = jax.lax.rsqrt(var + BN_EPS)                             # EUP
    scale = gamma_ref[...] * inv_std                                  # (1, TH)
    shift = beta_ref[...] - mean * scale                              # (1, TH)

    # ---- fused normalize + affine + ReLU + bf16 cast ----
    hn = jnp.maximum(h * scale + shift, 0.0).astype(jnp.bfloat16)     # (B, TH)

    # ---- Linear 2 partial: accumulate over H blocks ----
    acc_ref[...] += jnp.dot(hn, w2_ref[...], preferred_element_type=jnp.float32)

    @pl.when(k == pl.num_programs(0) - 1)
    def _():
        o_ref[...] = (acc_ref[...] + b2_ref[...]).astype(o_ref.dtype)


def projector_forward(x, w1, b1, gamma, beta, w2, b2, *, block_h=128):
    """Forward pass of `Projector`.

    x: (B, 512) f32 (cast to bf16 inside the kernel).
    Weights are stored (in, out) so the kernel computes x @ W.
    Store w1/w2 in bf16 and gamma/beta/b2 as (1, F) f32 at init time; the
    defensive casts below then compile to no-ops.

    b1 is accepted for interface parity with nn.Linear but is mathematically
    redundant: it cancels exactly under the following training-mode BatchNorm.
    (If this kernel were ever switched to eval-mode BN with running stats,
    b1 must be reinstated.)
    """
    del b1
    B, D_in = x.shape
    H = w1.shape[1]
    P = w2.shape[1]

    # No-op when params are already stored in kernel dtypes / layouts.
    w1 = w1.astype(jnp.bfloat16)
    w2 = w2.astype(jnp.bfloat16)
    gamma = gamma.reshape(1, H).astype(jnp.float32)
    beta = beta.reshape(1, H).astype(jnp.float32)
    b2 = b2.reshape(1, P).astype(jnp.float32)
    x = x.astype(jnp.float32)

    th = block_h if (H % block_h == 0 and H >= block_h) else H
    grid = (H // th,)

    flops = 2 * B * (D_in * H + H * P)
    bytes_accessed = (
        B * D_in * 4          # x (f32)
        + D_in * H * 2        # w1 (bf16)
        + H * P * 2           # w2 (bf16)
        + 2 * H * 4           # gamma, beta (f32)
        + P * 4               # b2 (f32)
        + B * P * 4           # output (f32)
    )

    return pl.pallas_call(
        _projector_kernel,
        out_shape=jax.ShapeDtypeStruct((B, P), jnp.float32),
        grid_spec=pltpu.PrefetchScalarGridSpec(
            num_scalar_prefetch=0,
            grid=grid,
            in_specs=[
                pl.BlockSpec((B, D_in), lambda k: (0, 0)),    # x: resident across H blocks
                pl.BlockSpec((D_in, th), lambda k: (0, k)),   # w1 column block
                pl.BlockSpec((1, th), lambda k: (0, k)),      # gamma block
                pl.BlockSpec((1, th), lambda k: (0, k)),      # beta block
                pl.BlockSpec((th, P), lambda k: (k, 0)),      # w2 row block
                pl.BlockSpec((1, P), lambda k: (0, 0)),       # b2: resident
            ],
            out_specs=pl.BlockSpec((B, P), lambda k: (0, 0)),  # accumulator output
            scratch_shapes=[pltpu.VMEM((B, P), jnp.float32)],
        ),
        compiler_params=pltpu.CompilerParams(
            # H axis is a reduction (linear-2 accumulation) -> arbitrary.
            dimension_semantics=("arbitrary",),
        ),
        cost_estimate=pl.CostEstimate(
            flops=flops, transcendentals=H, bytes_accessed=bytes_accessed
        ),
    )(x, w1, gamma, beta, w2, b2)


def _reference(x, w1, b1, gamma, beta, w2, b2):
    h = x @ w1 + b1
    mean = jnp.mean(h, axis=0, keepdims=True)
    var = jnp.mean((h - mean) ** 2, axis=0, keepdims=True)
    h = (h - mean) * jax.lax.rsqrt(var + BN_EPS) * gamma + beta
    h = jnp.maximum(h, 0.0)
    return h @ w2 + b2


if __name__ == "__main__":
    # Input dim is fixed at 512 by the module; projection_hidden_size=256,
    # projection_size=128 keep the demo small.  B=256 gives the MXU a real M
    # dimension and makes BN batch stats meaningful.
    B, D_IN, HID, PROJ = 256, 512, 256, 128

    key = jax.random.PRNGKey(0)
    kx, kw1, kb1, kw2, kb2 = jax.random.split(key, 5)

    x = jax.random.normal(kx, (B, D_IN), dtype=jnp.float32)

    # Deterministic PyTorch-style Linear init: U(-1/sqrt(fan_in), 1/sqrt(fan_in)).
    bound1 = 1.0 / (D_IN ** 0.5)
    w1_f32 = jax.random.uniform(kw1, (D_IN, HID), jnp.float32, -bound1, bound1)
    b1_f32 = jax.random.uniform(kb1, (HID,), jnp.float32, -bound1, bound1)

    bound2 = 1.0 / (HID ** 0.5)
    w2_f32 = jax.random.uniform(kw2, (HID, PROJ), jnp.float32, -bound2, bound2)
    b2_f32 = jax.random.uniform(kb2, (PROJ,), jnp.float32, -bound2, bound2)

    # BatchNorm1d default init: weight=1, bias=0.
    gamma_f32 = jnp.ones((HID,), jnp.float32)
    beta_f32 = jnp.zeros((HID,), jnp.float32)

    # One-time parameter materialization in the kernel's dtypes / layouts
    # (this is "init time", not per-call work).
    w1_k = w1_f32.astype(jnp.bfloat16)
    w2_k = w2_f32.astype(jnp.bfloat16)
    gamma_k = gamma_f32.reshape(1, HID)
    beta_k = beta_f32.reshape(1, HID)
    b2_k = b2_f32.reshape(1, PROJ)

    out = projector_forward(x, w1_k, b1_f32, gamma_k, beta_k, w2_k, b2_k)
    out = jax.block_until_ready(out)

    ref = _reference(x, w1_f32, b1_f32, gamma_f32, beta_f32, w2_f32, b2_f32)
    assert out.shape == (B, PROJ)
    # Tolerance accounts for bf16 matmul operands (f32 accumulation / f32 BN math).
    assert jnp.allclose(out, ref, atol=2e-2, rtol=2e-2), "mismatch vs reference"

    print("KERNEL_OK")
</pallas_src>

<mosaic_0001>
module attributes {stable_mosaic.version = 11 : i64} {
  func.func @_projector_kernel(%arg0: i32, %arg1: memref<256x512xf32, #tpu.memory_space<vmem>>, %arg2: memref<512x128xbf16, #tpu.memory_space<vmem>>, %arg3: memref<1x128xf32, #tpu.memory_space<vmem>>, %arg4: memref<1x128xf32, #tpu.memory_space<vmem>>, %arg5: memref<128x128xbf16, #tpu.memory_space<vmem>>, %arg6: memref<1x128xf32, #tpu.memory_space<vmem>>, %arg7: memref<256x128xf32, #tpu.memory_space<vmem>>, %arg8: memref<256x128xf32, #tpu.memory_space<vmem>>) attributes {dimension_semantics = [#tpu.dimension_semantics<arbitrary>], iteration_bounds = array<i64: 2>, scalar_prefetch = 0 : i64, scratch_operands = 1 : i64, tpu.core_type = #tpu.core_type<tc>, window_params = [{pipeline_mode = #tpu.pipeline_mode<synchronous>, transform_indices = @transform_0, window_bounds = array<i64: 256, 512>}, {transform_indices = @transform_1, window_bounds = array<i64: 512, 128>}, {transform_indices = @transform_2, window_bounds = array<i64: 1, 128>}, {transform_indices = @transform_3, window_bounds = array<i64: 1, 128>}, {transform_indices = @transform_4, window_bounds = array<i64: 128, 128>}, {pipeline_mode = #tpu.pipeline_mode<synchronous>, transform_indices = @transform_5, window_bounds = array<i64: 1, 128>}, {pipeline_mode = #tpu.pipeline_mode<synchronous>, transform_indices = @transform_6, window_bounds = array<i64: 256, 128>}]} {
    %c0_i32 = arith.constant 0 : i32
    %0 = arith.cmpi eq, %arg0, %c0_i32 : i32
    %1 = arith.extui %0 : i1 to i32
    %c0_i32_0 = arith.constant 0 : i32
    %2 = arith.cmpi ne, %1, %c0_i32_0 : i32
    scf.if %2 {
      %cst_23 = arith.constant 0.000000e+00 : f32
      %43 = vector.broadcast %cst_23 : f32 to vector<256x128xf32>
      %c0_24 = arith.constant 0 : index
      %c0_25 = arith.constant 0 : index
      %44 = vector.load %arg8[%c0_24, %c0_25] : memref<256x128xf32, #tpu.memory_space<vmem>>, vector<256x128xf32>
      tpu.vector_store %arg8[%c0_24, %c0_25], %43 {strides = array<i32>} : memref<256x128xf32, #tpu.memory_space<vmem>>, vector<256x128xf32>,
    } else {
    }
    %c0 = arith.constant 0 : index
    %c0_1 = arith.constant 0 : index
    %3 = vector.load %arg1[%c0, %c0_1] : memref<256x512xf32, #tpu.memory_space<vmem>>, vector<256x512xf32>
    %4 = arith.truncf %3 : vector<256x512xf32> to vector<256x512xbf16>
    %c0_2 = arith.constant 0 : index
    %c0_3 = arith.constant 0 : index
    %5 = vector.load %arg2[%c0_2, %c0_3] : memref<512x128xbf16, #tpu.memory_space<vmem>>, vector<512x128xbf16>
    %cst = arith.constant dense<0.000000e+00> : vector<256x128xf32>
    %6 = tpu.matmul %4, %5, %cst {dimension_numbers = #tpu.dot_dimension_numbers<[1], [0], [0], [1], [0, 0, 1, 1], [], []>} : vector<256x512xbf16>, vector<512x128xbf16>, vector<256x128xf32> -> vector<256x128xf32>
    %cst_4 = arith.constant dense<0.000000e+00> : vector<128xf32>
    %7 = vector.multi_reduction <add>, %6, %cst_4 [0] : vector<256x128xf32> to vector<128xf32>
    %8 = vector.shape_cast %7 : vector<128xf32> to vector<1x128xf32>
    %cst_5 = arith.constant 3.906250e-03 : f32
    %9 = vector.broadcast %cst_5 : f32 to vector<1x128xf32>
    %10 = arith.mulf %8, %9 : vector<1x128xf32>
    %11 = arith.mulf %6, %6 : vector<256x128xf32>
    %cst_6 = arith.constant dense<0.000000e+00> : vector<128xf32>
    %12 = vector.multi_reduction <add>, %11, %cst_6 [0] : vector<256x128xf32> to vector<128xf32>
    %13 = vector.shape_cast %12 : vector<128xf32> to vector<1x128xf32>
    %cst_7 = arith.constant 3.906250e-03 : f32
    %14 = vector.broadcast %cst_7 : f32 to vector<1x128xf32>
    %15 = arith.mulf %13, %14 : vector<1x128xf32>
    %16 = arith.mulf %10, %10 : vector<1x128xf32>
    %17 = arith.subf %15, %16 : vector<1x128xf32>
    %cst_8 = arith.constant 0.000000e+00 : f32
    %18 = vector.broadcast %cst_8 : f32 to vector<1x128xf32>
    %19 = arith.maximumf %17, %18 : vector<1x128xf32>
    %cst_9 = arith.constant 9.99999974E-6 : f32
    %20 = vector.broadcast %cst_9 : f32 to vector<1x128xf32>
    %21 = arith.addf %19, %20 : vector<1x128xf32>
    %22 = math.rsqrt %21 : vector<1x128xf32>
    %c0_10 = arith.constant 0 : index
    %c0_11 = arith.constant 0 : index
    %23 = vector.load %arg3[%c0_10, %c0_11] : memref<1x128xf32, #tpu.memory_space<vmem>>, vector<1x128xf32>
    %24 = arith.mulf %23, %22 : vector<1x128xf32>
    %c0_12 = arith.constant 0 : index
    %c0_13 = arith.constant 0 : index
    %25 = vector.load %arg4[%c0_12, %c0_13] : memref<1x128xf32, #tpu.memory_space<vmem>>, vector<1x128xf32>
    %26 = arith.mulf %10, %24 : vector<1x128xf32>
    %27 = arith.subf %25, %26 : vector<1x128xf32>
    %28 = vector.broadcast %24 : vector<1x128xf32> to vector<256x128xf32>
    %29 = arith.mulf %6, %28 : vector<256x128xf32>
    %30 = vector.broadcast %27 : vector<1x128xf32> to vector<256x128xf32>
    %31 = arith.addf %29, %30 : vector<256x128xf32>
    %cst_14 = arith.constant 0.000000e+00 : f32
    %32 = vector.broadcast %cst_14 : f32 to vector<256x128xf32>
    %33 = arith.maximumf %31, %32 : vector<256x128xf32>
    %34 = arith.truncf %33 : vector<256x128xf32> to vector<256x128xbf16>
    %c0_15 = arith.constant 0 : index
    %c0_16 = arith.constant 0 : index
    %35 = vector.load %arg8[%c0_15, %c0_16] : memref<256x128xf32, #tpu.memory_space<vmem>>, vector<256x128xf32>
    %c0_17 = arith.constant 0 : index
    %c0_18 = arith.constant 0 : index
    %36 = vector.load %arg5[%c0_17, %c0_18] : memref<128x128xbf16, #tpu.memory_space<vmem>>, vector<128x128xbf16>
    %cst_19 = arith.constant dense<0.000000e+00> : vector<256x128xf32>
    %37 = tpu.matmul %34, %36, %cst_19 {dimension_numbers = #tpu.dot_dimension_numbers<[1], [0], [0], [1], [0, 0, 1, 1], [], []>} : vector<256x128xbf16>, vector<128x128xbf16>, vector<256x128xf32> -> vector<256x128xf32>
    %38 = arith.addf %35, %37 : vector<256x128xf32>
    %c0_20 = arith.constant 0 : index
    %c0_21 = arith.constant 0 : index
    %39 = vector.load %arg8[%c0_20, %c0_21] : memref<256x128xf32, #tpu.memory_space<vmem>>, vector<256x128xf32>
    tpu.vector_store %arg8[%c0_20, %c0_21], %38 {strides = array<i32>} : memref<256x128xf32, #tpu.memory_space<vmem>>, vector<256x128xf32>,
    %c1_i32 = arith.constant 1 : i32
    %40 = arith.cmpi eq, %arg0, %c1_i32 : i32
    %41 = arith.extui %40 : i1 to i32
    %c0_i32_22 = arith.constant 0 : i32
    %42 = arith.cmpi ne, %41, %c0_i32_22 : i32
    scf.if %42 {
      %c0_23 = arith.constant 0 : index
      %c0_24 = arith.constant 0 : index
      %43 = vector.load %arg8[%c0_23, %c0_24] : memref<256x128xf32, #tpu.memory_space<vmem>>, vector<256x128xf32>
      %c0_25 = arith.constant 0 : index
      %c0_26 = arith.constant 0 : index
      %44 = vector.load %arg6[%c0_25, %c0_26] : memref<1x128xf32, #tpu.memory_space<vmem>>, vector<1x128xf32>
      %45 = vector.broadcast %44 : vector<1x128xf32> to vector<256x128xf32>
      %46 = arith.addf %43, %45 : vector<256x128xf32>
      %c0_27 = arith.constant 0 : index
      %c0_28 = arith.constant 0 : index
      %47 = vector.load %arg7[%c0_27, %c0_28] : memref<256x128xf32, #tpu.memory_space<vmem>>, vector<256x128xf32>
      tpu.vector_store %arg7[%c0_27, %c0_28], %46 {strides = array<i32>} : memref<256x128xf32, #tpu.memory_space<vmem>>, vector<256x128xf32>,
    } else {
    }
    return
  }
  func.func @transform_0(%arg0: i32) -> (i32, i32) {
    %c0_i32 = arith.constant 0 : i32
    %c0_i32_0 = arith.constant 0 : i32
    %c0_i32_1 = arith.constant 0 : i32
    return %c0_i32, %c0_i32_0 : i32, i32
  }
  func.func @transform_1(%arg0: i32) -> (i32, i32) {
    %c0_i32 = arith.constant 0 : i32
    %c0_i32_0 = arith.constant 0 : i32
    return %c0_i32, %arg0 : i32, i32
  }
  func.func @transform_2(%arg0: i32) -> (i32, i32) {
    %c0_i32 = arith.constant 0 : i32
    %c0_i32_0 = arith.constant 0 : i32
    return %c0_i32, %arg0 : i32, i32
  }
  func.func @transform_3(%arg0: i32) -> (i32, i32) {
    %c0_i32 = arith.constant 0 : i32
    %c0_i32_0 = arith.constant 0 : i32
    return %c0_i32, %arg0 : i32, i32
  }
  func.func @transform_4(%arg0: i32) -> (i32, i32) {
    %c0_i32 = arith.constant 0 : i32
    %c0_i32_0 = arith.constant 0 : i32
    return %arg0, %c0_i32 : i32, i32
  }
  func.func @transform_5(%arg0: i32) -> (i32, i32) {
    %c0_i32 = arith.constant 0 : i32
    %c0_i32_0 = arith.constant 0 : i32
    %c0_i32_1 = arith.constant 0 : i32
    return %c0_i32, %c0_i32_0 : i32, i32
  }
  func.func @transform_6(%arg0: i32) -> (i32, i32) {
    %c0_i32 = arith.constant 0 : i32
    %c0_i32_0 = arith.constant 0 : i32
    %c0_i32_1 = arith.constant 0 : i32
    return %c0_i32, %c0_i32_0 : i32, i32
  }
}

</mosaic_0001>

<llo_original>
// kernel: tpu_custom_call.1
$region0: #{tpu_custom_call.1}
  #allocation0 [shape = 'u32[]', space=smem, size = 0x4, offset = 0x4, fixed_abs, tag = 'smem constant byte address 0x4 - core index']
  #allocation1 [shape = 'u32[144,128]{1,0:T(1,128)}', space=vmem, size = 0x12000, scoped, tag = 'internal scratch']
  #allocation2 [shape = 'f32[256,128]{1,0:T(8,128)}', space=vmem, size = 0x20000, scoped, tag = 'scratch operand']
  %s0 = inlined_call_operand.hbm [shape: f32[256,512], index: 0, kind: input, shape index: {}]
  %s1 = inlined_call_operand.hbm [shape: bf16[512,256], index: 1, kind: input, shape index: {}]
  %s2 = inlined_call_operand.vmem [shape: f32[1,256], index: 2, kind: input, shape index: {}]
  %s3 = inlined_call_operand.vmem [shape: f32[1,256], index: 3, kind: input, shape index: {}]
  %s4 = inlined_call_operand.hbm [shape: bf16[256,128], index: 4, kind: input, shape index: {}]
  %s5 = inlined_call_operand.vmem [shape: f32[1,128], index: 5, kind: input, shape index: {}]
  %s6 = inlined_call_operand.hbm [shape: f32[256,128], index: 6, kind: output, shape index: {}]
  %s7 = sld [smem:[#allocation0]]
  $region77: #{tpu_custom_call.1} parent=0
    _
  %s9 = ssub.s32 1, %s7
  %s10 = scalar_select 0, %s9, %s7
  $region1: #{tpu_custom_call.1} parent=0
    #allocation3 [shape = 'u8[524288]{0}', space=vmem, size = 0x80000, scoped, tag = 'input window, operand 0, single buffered']
    #allocation4 [shape = 's32[2]{0}', space=sflag, size = 0x8, scoped, tag = 'scoped memory for tpu_custom_call.1']
    #allocation5 [shape = 's32[2]{0}', space=sflag, size = 0x8, scoped, tag = 'scoped memory for tpu_custom_call.1']
    #allocation6 [shape = 'u8[262144]{0}', space=vmem, size = 0x40000, scoped, tag = 'input window, operand 1']
    #allocation7 [shape = 's32[2]{0}', space=sflag, size = 0x8, scoped, tag = 'scoped memory for tpu_custom_call.1']
    #allocation8 [shape = 'u8[65536]{0}', space=vmem, size = 0x10000, scoped, tag = 'input window, operand 4']
    #allocation9 [shape = 'u8[131072]{0}', space=vmem, size = 0x20000, scoped, tag = 'output window, operand 0, single buffered']
    %11 = vsyncpa [#allocation4], 0
    %12 = vsyncpa [#allocation7], 0
    %s13 = scalar_lea.sflag [#allocation7], 1
    %14 = vsyncpa %s13, 0
    %15 = vsyncpa [#allocation5], 0
    loop: start=0, step=1, limit=4
    $region2: #{tpu_custom_call.1} parent=1 // loop_pre_header
      _
    $region3: #{tpu_custom_call.1} parent=1 // loop_header
      %s17 = sphi 0, %s21
      %p18 = scmp.ge.s32.totalorder %s17, 4
      %s25 = sphi 0, %s25
      %s27 = sphi 0, %s25
      %s28 = sphi 0, %s27
      %s42 = sphi 0, %s28
      %s48 = sphi 0, %s50
      %s51 = sphi 0, %s48
      %s52 = sphi 0, %s51
      %s68 = sphi 0, %s52
      %s74 = sphi 0, %s76
      %s77 = sphi 0, %s74
      %s78 = sphi 0, %s77
      %s94 = sphi 0, %s78
      %s100 = sphi 0, %s102
      %s103 = sphi 0, %s100
      %s104 = sphi 0, %s103
      %s120 = sphi 0, %s104
      %s126 = sphi 0, %s128
      %s129 = sphi 0, %s126
      %s130 = sphi 0, %s129
      %s146 = sphi 0, %s130
      %s150 = sphi 0, %s150
      %s152 = sphi 0, %s150
      %s153 = sphi 0, %s152
      %s167 = sphi 0, %s153
      %s171 = sphi 0, %s171
      %s173 = sphi 0, %s171
      %s174 = sphi 0, %s173
      %s188 = sphi 0, %s174
    $region4: #{tpu_custom_call.1} parent=1 // loop_header_branch
      %20 = sbr.rel (%p18) target = $region8
    $region5: #{tpu_custom_call.1} parent=1 // loop_body
      %s22 = ssub.s32 %s17, 1
      %s23 = ssub.s32 %s17, 2
      %s24 = sadd.s32 %s17, 1
      %s26 = sadd.s32 %s25, 1
      %p29 = scmp.eq.s32.totalorder %s17, 1
      %p30 = scmp.ne.s32.totalorder %s25, %s27
      %p31 = scmp.eq.s32.totalorder %s17, 0
      %p32 = por %p30, %p31
      %p33 = scmp.ne.s32.totalorder %s25, %s27
      %p34 = scmp.eq.s32.totalorder %s22, 1
      %p35 = por %p33, %p34
      %p36 = scmp.ne.s32.totalorder %s27, %s28
      %p37 = scmp.eq.s32.totalorder %s22, 0
      %p38 = por %p36, %p37
      %p39 = scmp.ne.s32.totalorder %s27, %s28
      %p40 = scmp.eq.s32.totalorder %s23, 1
      %p41 = por %p39, %p40
      %p43 = scmp.ne.s32.totalorder %s28, %s42
      %p44 = scmp.eq.s32.totalorder %s23, 0
      %p45 = por %p43, %p44
      %s46 = ssub.s32 %s17, %s24
      %p47 = scmp.eq.s32.totalorder %s46, 0
      %s49 = sadd.s32 %s48, 1
      %s50 = scalar_select %p47, %s48, %s49
      %p53 = pneg %p47
      %p54 = scmp.eq.s32.totalorder %s17, 1
      %p55 = por %p53, %p54
      %p56 = scmp.ne.s32.totalorder %s48, %s51
      %p57 = scmp.eq.s32.totalorder %s17, 0
      %p58 = por %p56, %p57
      %p59 = scmp.ne.s32.totalorder %s48, %s51
      %p60 = scmp.eq.s32.totalorder %s22, 1
      %p61 = por %p59, %p60
      %p62 = scmp.ne.s32.totalorder %s51, %s52
      %p63 = scmp.eq.s32.totalorder %s22, 0
      %p64 = por %p62, %p63
      %p65 = scmp.ne.s32.totalorder %s51, %s52
      %p66 = scmp.eq.s32.totalorder %s23, 1
      %p67 = por %p65, %p66
      %p69 = scmp.ne.s32.totalorder %s52, %s68
      %p70 = scmp.eq.s32.totalorder %s23, 0
      %p71 = por %p69, %p70
      %s72 = ssub.s32 %s17, %s24
      %p73 = scmp.eq.s32.totalorder %s72, 0
      %s75 = sadd.s32 %s74, 1
      %s76 = scalar_select %p73, %s74, %s75
      %p79 = pneg %p73
      %p80 = scmp.eq.s32.totalorder %s17, 1
      %p81 = por %p79, %p80
      %p82 = scmp.ne.s32.totalorder %s74, %s77
      %p83 = scmp.eq.s32.totalorder %s17, 0
      %p84 = por %p82, %p83
      %p85 = scmp.ne.s32.totalorder %s74, %s77
      %p86 = scmp.eq.s32.totalorder %s22, 1
      %p87 = por %p85, %p86
      %p88 = scmp.ne.s32.totalorder %s77, %s78
      %p89 = scmp.eq.s32.totalorder %s22, 0
      %p90 = por %p88, %p89
      %p91 = scmp.ne.s32.totalorder %s77, %s78
      %p92 = scmp.eq.s32.totalorder %s23, 1
      %p93 = por %p91, %p92
      %p95 = scmp.ne.s32.totalorder %s78, %s94
      %p96 = scmp.eq.s32.totalorder %s23, 0
      %p97 = por %p95, %p96
      %s98 = ssub.s32 %s17, %s24
      %p99 = scmp.eq.s32.totalorder %s98, 0
      %s101 = sadd.s32 %s100, 1
      %s102 = scalar_select %p99, %s100, %s101
      %p105 = pneg %p99
      %p106 = scmp.eq.s32.totalorder %s17, 1
      %p107 = por %p105, %p106
      %p108 = scmp.ne.s32.totalorder %s100, %s103
      %p109 = scmp.eq.s32.totalorder %s17, 0
      %p110 = por %p108, %p109
      %p111 = scmp.ne.s32.totalorder %s100, %s103
      %p112 = scmp.eq.s32.totalorder %s22, 1
      %p113 = por %p111, %p112
      %p114 = scmp.ne.s32.totalorder %s103, %s104
      %p115 = scmp.eq.s32.totalorder %s22, 0
      %p116 = por %p114, %p115
      %p117 = scmp.ne.s32.totalorder %s103, %s104
      %p118 = scmp.eq.s32.totalorder %s23, 1
      %p119 = por %p117, %p118
      %p121 = scmp.ne.s32.totalorder %s104, %s120
      %p122 = scmp.eq.s32.totalorder %s23, 0
      %p123 = por %p121, %p122
      %s124 = ssub.s32 %s17, %s24
      %p125 = scmp.eq.s32.totalorder %s124, 0
      %s127 = sadd.s32 %s126, 1
      %s128 = scalar_select %p125, %s126, %s127
      %p131 = pneg %p125
      %p132 = scmp.eq.s32.totalorder %s17, 1
      %p133 = por %p131, %p132
      %p134 = scmp.ne.s32.totalorder %s126, %s129
      %p135 = scmp.eq.s32.totalorder %s17, 0
      %p136 = por %p134, %p135
      %p137 = scmp.ne.s32.totalorder %s126, %s129
      %p138 = scmp.eq.s32.totalorder %s22, 1
      %p139 = por %p137, %p138
      %p140 = scmp.ne.s32.totalorder %s129, %s130
      %p141 = scmp.eq.s32.totalorder %s22, 0
      %p142 = por %p140, %p141
      %p143 = scmp.ne.s32.totalorder %s129, %s130
      %p144 = scmp.eq.s32.totalorder %s23, 1
      %p145 = por %p143, %p144
      %p147 = scmp.ne.s32.totalorder %s130, %s146
      %p148 = scmp.eq.s32.totalorder %s23, 0
      %p149 = por %p147, %p148
      %s151 = sadd.s32 %s150, 1
      %p154 = scmp.eq.s32.totalorder %s17, 1
      %p155 = scmp.ne.s32.totalorder %s150, %s152
      %p156 = scmp.eq.s32.totalorder %s17, 0
      %p157 = por %p155, %p156
      %p158 = scmp.ne.s32.totalorder %s150, %s152
      %p159 = scmp.eq.s32.totalorder %s22, 1
      %p160 = por %p158, %p159
      %p161 = scmp.ne.s32.totalorder %s152, %s153
      %p162 = scmp.eq.s32.totalorder %s22, 0
      %p163 = por %p161, %p162
      %p164 = scmp.ne.s32.totalorder %s152, %s153
      %p165 = scmp.eq.s32.totalorder %s23, 1
      %p166 = por %p164, %p165
      %p168 = scmp.ne.s32.totalorder %s153, %s167
      %p169 = scmp.eq.s32.totalorder %s23, 0
      %p170 = por %p168, %p169
      %s172 = sadd.s32 %s171, 1
      %p175 = scmp.eq.s32.totalorder %s17, 1
      %p176 = scmp.ne.s32.totalorder %s171, %s173
      %p177 = scmp.eq.s32.totalorder %s17, 0
      %p178 = por %p176, %p177
      %p179 = scmp.ne.s32.totalorder %s171, %s173
      %p180 = scmp.eq.s32.totalorder %s22, 1
      %p181 = por %p179, %p180
      %p182 = scmp.ne.s32.totalorder %s173, %s174
      %p183 = scmp.eq.s32.totalorder %s22, 0
      %p184 = por %p182, %p183
      %p185 = scmp.ne.s32.totalorder %s173, %s174
      %p186 = scmp.eq.s32.totalorder %s23, 1
      %p187 = por %p185, %p186
      %p189 = scmp.ne.s32.totalorder %s174, %s188
      %p190 = scmp.eq.s32.totalorder %s23, 0
      %p191 = por %p189, %p190
      %p192 = scmp.le.s32.totalorder 1, %s17
      %p193 = scmp.lt.s32.totalorder %s17, 3
      %p194 = pnand %p192, %p193
      %p195 = pneg %p194
      // Predicated region
      $region9: #{tpu_custom_call.1} parent=5 // pred_check
        _
      $region10: #{tpu_custom_call.1} parent=5 // pred_check_branch
        %197 = sbr.rel (%p194) target = $region12
      $region11: #{tpu_custom_call.1} parent=5 // pred_region
        %s198 = ssub.s32 %s17, 1
        // Predicated region
        $region13: #{tpu_custom_call.1} parent=11 // pred_check
          %p199 = pneg %p38
        $region14: #{tpu_custom_call.1} parent=11 // pred_check_branch
          %201 = sbr.rel (%p199) target = $region16
        $region15: #{tpu_custom_call.1} parent=11 // pred_region
          %s203 = ssub.s32 16384, 16384
          %204 = vsyncadd [#allocation4], %s203
          %s205 = sshll.u32 [#allocation3], 4
          %s206 = int_to_ptr.vmem [resolvable:$true] %s205
          %211 = dma.hbm_to_vmem [thread:$0]  %s0, 16384, %s206, [#allocation4], 512, 512, 32
        $region16: #{tpu_custom_call.1} parent=11 // pred_fallthru
          _
        // Predicated region
        $region17: #{tpu_custom_call.1} parent=11 // pred_check
          %p212 = pneg %p163
        $region18: #{tpu_custom_call.1} parent=11 // pred_check_branch
          %214 = sbr.rel (%p212) target = $region20
        $region19: #{tpu_custom_call.1} parent=11 // pred_region
          _
        $region20: #{tpu_custom_call.1} parent=11 // pred_fallthru
          _
      $region12: #{tpu_custom_call.1} parent=5 // pred_fallthru
        _
      %p215 = scmp.lt.s32.totalorder %s17, 2
      // Predicated region
      $region21: #{tpu_custom_call.1} parent=5 // pred_check
        %p216 = pneg %p215
      $region22: #{tpu_custom_call.1} parent=5 // pred_check_branch
        %218 = sbr.rel (%p216) target = $region24
      $region23: #{tpu_custom_call.1} parent=5 // pred_region
        // Predicated region
        $region25: #{tpu_custom_call.1} parent=23 // pred_check
          %p219 = pneg %p58
        $region26: #{tpu_custom_call.1} parent=23 // pred_check_branch
          %221 = sbr.rel (%p219) target = $region28
        $region27: #{tpu_custom_call.1} parent=23 // pred_region
          %s222 = sand.u32 %s17, 1
          %s223 = scalar_lea.sflag [#allocation7], %s222
          %s224 = sand.u32 %s48, 1
          %s225 = smul.addr %s224, 256
          %s226 = scalar_lea.vmem [#allocation6], %s225
          %s228 = ssub.s32 4096, 4096
          %229 = vsyncadd %s223, %s228
          %s230 = smul.addr %s17, 64
          %s231 = scalar_lea.hbm %s1, %s230
          %s232 = sshll.u32 %s226, 4
          %s233 = int_to_ptr.vmem [resolvable:$true] %s232
          %238 = dma.hbm_to_vmem [thread:$0]  %s231, 4096, %s233, %s223, 128, 64, 4
        $region28: #{tpu_custom_call.1} parent=23 // pred_fallthru
          _
        // Predicated region
        $region29: #{tpu_custom_call.1} parent=23 // pred_check
          %p239 = pneg %p84
        $region30: #{tpu_custom_call.1} parent=23 // pred_check_branch
          %241 = sbr.rel (%p239) target = $region32
        $region31: #{tpu_custom_call.1} parent=23 // pred_region
          %p242 = scmp.lt.s32.totalorder %s17, 1
          %s243 = scalar_select %p242, %s17, 1
          %s244 = scalar_lea.vmem %s2, %s243
        $region32: #{tpu_custom_call.1} parent=23 // pred_fallthru
          _
        // Predicated region
        $region33: #{tpu_custom_call.1} parent=23 // pred_check
          %p245 = pneg %p110
        $region34: #{tpu_custom_call.1} parent=23 // pred_check_branch
          %247 = sbr.rel (%p245) target = $region36
        $region35: #{tpu_custom_call.1} parent=23 // pred_region
          %p248 = scmp.lt.s32.totalorder %s17, 1
          %s249 = scalar_select %p248, %s17, 1
          %s250 = scalar_lea.vmem %s3, %s249
        $region36: #{tpu_custom_call.1} parent=23 // pred_fallthru
          _
        // Predicated region
        $region37: #{tpu_custom_call.1} parent=23 // pred_check
          %p251 = pneg %p136
        $region38: #{tpu_custom_call.1} parent=23 // pred_check_branch
          %253 = sbr.rel (%p251) target = $region40
        $region39: #{tpu_custom_call.1} parent=23 // pred_region
          %s254 = sand.u32 %s17, 1
          %s255 = scalar_lea.sflag [#allocation7], %s254
          %s256 = sand.u32 %s126, 1
          %s257 = smul.addr %s256, 64
          %s258 = scalar_lea.vmem [#allocation8], %s257
          %s259 = smul.u32 16, %s17
          %s261 = ssub.s32 1024, 1024
          %262 = vsyncadd %s255, %s261
          %s263 = smul.addr %s259, 64
          %s264 = scalar_lea.hbm %s4, %s263
          %s265 = sshll.u32 %s258, 4
          %s266 = int_to_ptr.vmem [resolvable:$true] %s265
          %271 = dma.hbm_to_vmem [thread:$0]  %s264, 1024, %s266, %s255, 64, 64, 4
        $region40: #{tpu_custom_call.1} parent=23 // pred_fallthru
          _
      $region24: #{tpu_custom_call.1} parent=5 // pred_fallthru
        _
      %p272 = scmp.le.s32.totalorder 1, %s17
      %p273 = scmp.lt.s32.totalorder %s17, 3
      %p274 = pnand %p272, %p273
      %p275 = pneg %p274
      // Predicated region
      $region41: #{tpu_custom_call.1} parent=5 // pred_check
        _
      $region42: #{tpu_custom_call.1} parent=5 // pred_check_branch
        %277 = sbr.rel (%p274) target = $region44
      $region43: #{tpu_custom_call.1} parent=5 // pred_region
        %s278 = ssub.s32 %s17, 1
        // Predicated region
        $region45: #{tpu_custom_call.1} parent=43 // pred_check
          %p279 = pneg %p38
        $region46: #{tpu_custom_call.1} parent=43 // pred_check_branch
          %281 = sbr.rel (%p279) target = $region48
        $region47: #{tpu_custom_call.1} parent=43 // pred_region
          %282 = dma.done [#allocation4], 16384
        $region48: #{tpu_custom_call.1} parent=43 // pred_fallthru
          _
        %s283 = sand.u32 %s22, 1
        %s284 = scalar_lea.sflag [#allocation7], %s283
        %s285 = sand.u32 %s51, 1
        %s286 = smul.addr %s285, 256
        %s287 = scalar_lea.vmem [#allocation6], %s286
        // Predicated region
        $region49: #{tpu_custom_call.1} parent=43 // pred_check
          %p288 = pneg %p64
        $region50: #{tpu_custom_call.1} parent=43 // pred_check_branch
          %290 = sbr.rel (%p288) target = $region52
        $region51: #{tpu_custom_call.1} parent=43 // pred_region
          %291 = dma.done %s284, 4096
        $region52: #{tpu_custom_call.1} parent=43 // pred_fallthru
          _
        %s292 = sand.u32 %s22, 1
        %s293 = scalar_lea.sflag [#allocation7], %s292
        %s294 = sand.u32 %s129, 1
        %s295 = smul.addr %s294, 64
        %s296 = scalar_lea.vmem [#allocation8], %s295
        // Predicated region
        $region53: #{tpu_custom_call.1} parent=43 // pred_check
          %p297 = pneg %p142
        $region54: #{tpu_custom_call.1} parent=43 // pred_check_branch
          %299 = sbr.rel (%p297) target = $region56
        $region55: #{tpu_custom_call.1} parent=43 // pred_region
          %300 = dma.done %s293, 1024
        $region56: #{tpu_custom_call.1} parent=43 // pred_fallthru
          _
        %p301 = pneg %p38
        %p302 = pneg %p35
        %s303 = sand.u32 %s22, 1
        %s304 = scalar_lea.sflag [#allocation7], %s303
        %s305 = sand.u32 %s51, 1
        %s306 = smul.addr %s305, 256
        %s307 = scalar_lea.vmem [#allocation6], %s306
        %p308 = pneg %p64
        %p309 = pneg %p61
        %p310 = scmp.lt.s32.totalorder %s22, 1
        %s311 = scalar_select %p310, %s22, 1
        %s312 = scalar_lea.vmem %s2, %s311
        %p313 = pneg %p90
        %p314 = pneg %p87
        %p315 = scmp.lt.s32.totalorder %s22, 1
        %s316 = scalar_select %p315, %s22, 1
        %s317 = scalar_lea.vmem %s3, %s316
        %p318 = pneg %p116
        %p319 = pneg %p113
        %s320 = sand.u32 %s22, 1
        %s321 = scalar_lea.sflag [#allocation7], %s320
        %s322 = sand.u32 %s129, 1
        %s323 = smul.addr %s322, 64
        %s324 = scalar_lea.vmem [#allocation8], %s323
        %p325 = pneg %p142
        %p326 = pneg %p139
        %p327 = pneg %p163
        %p328 = pneg %p160
        %p329 = pneg %p184
        %p330 = pneg %p181
        %p331 = scmp.lt.s32.totalorder %s22, 1
        %s332 = scalar_select %p331, %s22, 1
        %s333 = scalar_lea.vmem %s2, %s332
        %p334 = scmp.lt.s32.totalorder %s22, 1
        %s335 = scalar_select %p334, %s22, 1
        %s336 = scalar_lea.vmem %s3, %s335
        %s337 = smul.u32 16, %s22
        %p339 = scmp.eq.s32.totalorder %s22, 0
        // Predicated region
        $region57: #{tpu_custom_call.1} parent=43 // pred_check
          %p340 = pneg %p339
        $region58: #{tpu_custom_call.1} parent=43 // pred_check_branch
          %342 = sbr.rel (%p340) target = $region60
        $region59: #{tpu_custom_call.1} parent=43 // pred_region
          %343 = vst [vmem:[#allocation2] sm:$0xff] 0.0
          %344 = vst [vmem:[#allocation2 + $0x8] sm:$0xff] 0.0
          %345 = vst [vmem:[#allocation2 + $0x10] sm:$0xff] 0.0
          %346 = vst [vmem:[#allocation2 + $0x18] sm:$0xff] 0.0
          %347 = vst [vmem:[#allocation2 + $0x20] sm:$0xff] 0.0
          %348 = vst [vmem:[#allocation2 + $0x28] sm:$0xff] 0.0
          %349 = vst [vmem:[#allocation2 + $0x30] sm:$0xff] 0.0
          %350 = vst [vmem:[#allocation2 + $0x38] sm:$0xff] 0.0
          %351 = vst [vmem:[#allocation2 + $0x40] sm:$0xff] 0.0
          %352 = vst [vmem:[#allocation2 + $0x48] sm:$0xff] 0.0
          %353 = vst [vmem:[#allocation2 + $0x50] sm:$0xff] 0.0
          %354 = vst [vmem:[#allocation2 + $0x58] sm:$0xff] 0.0
          %355 = vst [vmem:[#allocation2 + $0x60] sm:$0xff] 0.0
          %356 = vst [vmem:[#allocation2 + $0x68] sm:$0xff] 0.0
          %357 = vst [vmem:[#allocation2 + $0x70] sm:$0xff] 0.0
          %358 = vst [vmem:[#allocation2 + $0x78] sm:$0xff] 0.0
          %359 = vst [vmem:[#allocation2 + $0x80] sm:$0xff] 0.0
          %360 = vst [vmem:[#allocation2 + $0x88] sm:$0xff] 0.0
          %361 = vst [vmem:[#allocation2 + $0x90] sm:$0xff] 0.0
          %362 = vst [vmem:[#allocation2 + $0x98] sm:$0xff] 0.0
          %363 = vst [vmem:[#allocation2 + $0xa0] sm:$0xff] 0.0
          %364 = vst [vmem:[#allocation2 + $0xa8] sm:$0xff] 0.0
          %365 = vst [vmem:[#allocation2 + $0xb0] sm:$0xff] 0.0
          %366 = vst [vmem:[#allocation2 + $0xb8] sm:$0xff] 0.0
          %367 = vst [vmem:[#allocation2 + $0xc0] sm:$0xff] 0.0
          %368 = vst [vmem:[#allocation2 + $0xc8] sm:$0xff] 0.0
          %369 = vst [vmem:[#allocation2 + $0xd0] sm:$0xff] 0.0
          %370 = vst [vmem:[#allocation2 + $0xd8] sm:$0xff] 0.0
          %371 = vst [vmem:[#allocation2 + $0xe0] sm:$0xff] 0.0
          %372 = vst [vmem:[#allocation2 + $0xe8] sm:$0xff] 0.0
          %373 = vst [vmem:[#allocation2 + $0xf0] sm:$0xff] 0.0
          %374 = vst [vmem:[#allocation2 + $0xf8] sm:$0xff] 0.0
        $region60: #{tpu_custom_call.1} parent=43 // pred_fallthru
          _
        %v375 = vld [vmem:[#allocation3] sm:$0xff]
        %v376 = vld [vmem:[#allocation3 + $0x8] sm:$0xff]
        %v377 = vld [vmem:[#allocation3 + $0x10] sm:$0xff]
        %v378 = vld [vmem:[#allocation3 + $0x18] sm:$0xff]
        %v379 = vld [vmem:[#allocation3 + $0x20] sm:$0xff]
        %v380 = vld [vmem:[#allocation3 + $0x28] sm:$0xff]
        %v381 = vld [vmem:[#allocation3 + $0x30] sm:$0xff]
        %v382 = vld [vmem:[#allocation3 + $0x38] sm:$0xff]
        %v383 = vld [vmem:[#allocation3 + $0x40] sm:$0xff]
        %v384 = vld [vmem:[#allocation3 + $0x48] sm:$0xff]
        %v385 = vld [vmem:[#allocation3 + $0x50] sm:$0xff]
        %v386 = vld [vmem:[#allocation3 + $0x58] sm:$0xff]
        %v387 = vld [vmem:[#allocation3 + $0x60] sm:$0xff]
        %v388 = vld [vmem:[#allocation3 + $0x68] sm:$0xff]
        %v389 = vld [vmem:[#allocation3 + $0x70] sm:$0xff]
        %v390 = vld [vmem:[#allocation3 + $0x78] sm:$0xff]
        %v391 = vld [vmem:[#allocation3 + $0x80] sm:$0xff]
        %v392 = vld [vmem:[#allocation3 + $0x88] sm:$0xff]
        %v393 = vld [vmem:[#allocation3 + $0x90] sm:$0xff]
        %v394 = vld [vmem:[#allocation3 + $0x98] sm:$0xff]
        %v395 = vld [vmem:[#allocation3 + $0xa0] sm:$0xff]
        %v396 = vld [vmem:[#allocation3 + $0xa8] sm:$0xff]
        %v397 = vld [vmem:[#allocation3 + $0xb0] sm:$0xff]
        %v398 = vld [vmem:[#allocation3 + $0xb8] sm:$0xff]
        %v399 = vld [vmem:[#allocation3 + $0xc0] sm:$0xff]
        %v400 = vld [vmem:[#allocation3 + $0xc8] sm:$0xff]
        %v401 = vld [vmem:[#allocation3 + $0xd0] sm:$0xff]
        %v402 = vld [vmem:[#allocation3 + $0xd8] sm:$0xff]
        %v403 = vld [vmem:[#allocation3 + $0xe0] sm:$0xff]
        %v404 = vld [vmem:[#allocation3 + $0xe8] sm:$0xff]
        %v405 = vld [vmem:[#allocation3 + $0xf0] sm:$0xff]
        %v406 = vld [vmem:[#allocation3 + $0xf8] sm:$0xff]
        %v407 = vld [vmem:[#allocation3 + $0x100] sm:$0xff]
        %v408 = vld [vmem:[#allocation3 + $0x108] sm:$0xff]
        %v409 = vld [vmem:[#allocation3 + $0x110] sm:$0xff]
        %v410 = vld [vmem:[#allocation3 + $0x118] sm:$0xff]
        %v411 = vld [vmem:[#allocation3 + $0x120] sm:$0xff]
        %v412 = vld [vmem:[#allocation3 + $0x128] sm:$0xff]
        %v413 = vld [vmem:[#allocation3 + $0x130] sm:$0xff]
        %v414 = vld [vmem:[#allocation3 + $0x138] sm:$0xff]
        %v415 = vld [vmem:[#allocation3 + $0x140] sm:$0xff]
        %v416 = vld [vmem:[#allocation3 + $0x148] sm:$0xff]
        %v417 = vld [vmem:[#allocation3 + $0x150] sm:$0xff]
        %v418 = vld [vmem:[#allocation3 + $0x158] sm:$0xff]
        %v419 = vld [vmem:[#allocation3 + $0x160] sm:$0xff]
        %v420 = vld [vmem:[#allocation3 + $0x168] sm:$0xff]
        %v421 = vld [vmem:[#allocation3 + $0x170] sm:$0xff]
        %v422 = vld [vmem:[#allocation3 + $0x178] sm:$0xff]
        %v423 = vld [vmem:[#allocation3 + $0x180] sm:$0xff]
        %v424 = vld [vmem:[#allocation3 + $0x188] sm:$0xff]
        %v425 = vld [vmem:[#allocation3 + $0x190] sm:$0xff]
        %v426 = vld [vmem:[#allocation3 + $0x198] sm:$0xff]
        %v427 = vld [vmem:[#allocation3 + $0x1a0] sm:$0xff]
        %v428 = vld [vmem:[#allocation3 + $0x1a8] sm:$0xff]
        %v429 = vld [vmem:[#allocation3 + $0x1b0] sm:$0xff]
        %v430 = vld [vmem:[#allocation3 + $0x1b8] sm:$0xff]
        %v431 = vld [vmem:[#allocation3 + $0x1c0] sm:$0xff]
        %v432 = vld [vmem:[#allocation3 + $0x1c8] sm:$0xff]
        %v433 = vld [vmem:[#allocation3 + $0x1d0] sm:$0xff]
        %v434 = vld [vmem:[#allocation3 + $0x1d8] sm:$0xff]
        %v435 = vld [vmem:[#allocation3 + $0x1e0] sm:$0xff]
        %v436 = vld [vmem:[#allocation3 + $0x1e8] sm:$0xff]
        %v437 = vld [vmem:[#allocation3 + $0x1f0] sm:$0xff]
        %v438 = vld [vmem:[#allocation3 + $0x1f8] sm:$0xff]
        %v439 = vld [vmem:[#allocation3 + $0x200] sm:$0xff]
        %v440 = vld [vmem:[#allocation3 + $0x208] sm:$0xff]
        %v441 = vld [vmem:[#allocation3 + $0x210] sm:$0xff]
        %v442 = vld [vmem:[#allocation3 + $0x218] sm:$0xff]
        %v443 = vld [vmem:[#allocation3 + $0x220] sm:$0xff]
        %v444 = vld [vmem:[#allocation3 + $0x228] sm:$0xff]
        %v445 = vld [vmem:[#allocation3 + $0x230] sm:$0xff]
        %v446 = vld [vmem:[#allocation3 + $0x238] sm:$0xff]
        %v447 = vld [vmem:[#allocation3 + $0x240] sm:$0xff]
        %v448 = vld [vmem:[#allocation3 + $0x248] sm:$0xff]
        %v449 = vld [vmem:[#allocation3 + $0x250] sm:$0xff]
        %v450 = vld [vmem:[#allocation3 + $0x258] sm:$0xff]
        %v451 = vld [vmem:[#allocation3 + $0x260] sm:$0xff]
        %v452 = vld [vmem:[#allocation3 + $0x268] sm:$0xff]
        %v453 = vld [vmem:[#allocation3 + $0x270] sm:$0xff]
        %v454 = vld [vmem:[#allocation3 + $0x278] sm:$0xff]
        %v455 = vld [vmem:[#allocation3 + $0x280] sm:$0xff]
        %v456 = vld [vmem:[#allocation3 + $0x288] sm:$0xff]
        %v457 = vld [vmem:[#allocation3 + $0x290] sm:$0xff]
        %v458 = vld [vmem:[#allocation3 + $0x298] sm:$0xff]
        %v459 = vld [vmem:[#allocation3 + $0x2a0] sm:$0xff]
        %v460 = vld [vmem:[#allocation3 + $0x2a8] sm:$0xff]
        %v461 = vld [vmem:[#allocation3 + $0x2b0] sm:$0xff]
        %v462 = vld [vmem:[#allocation3 + $0x2b8] sm:$0xff]
        %v463 = vld [vmem:[#allocation3 + $0x2c0] sm:$0xff]
        %v464 = vld [vmem:[#allocation3 + $0x2c8] sm:$0xff]
        %v465 = vld [vmem:[#allocation3 + $0x2d0] sm:$0xff]
        %v466 = vld [vmem:[#allocation3 + $0x2d8] sm:$0xff]
        %v467 = vld [vmem:[#allocation3 + $0x2e0] sm:$0xff]
        %v468 = vld [vmem:[#allocation3 + $0x2e8] sm:$0xff]
        %v469 = vld [vmem:[#allocation3 + $0x2f0] sm:$0xff]
        %v470 = vld [vmem:[#allocation3 + $0x2f8] sm:$0xff]
        %v471 = vld [vmem:[#allocation3 + $0x300] sm:$0xff]
        %v472 = vld [vmem:[#allocation3 + $0x308] sm:$0xff]
        %v473 = vld [vmem:[#allocation3 + $0x310] sm:$0xff]
        %v474 = vld [vmem:[#allocation3 + $0x318] sm:$0xff]
        %v475 = vld [vmem:[#allocation3 + $0x320] sm:$0xff]
        %v476 = vld [vmem:[#allocation3 + $0x328] sm:$0xff]
        %v477 = vld [vmem:[#allocation3 + $0x330] sm:$0xff]
        %v478 = vld [vmem:[#allocation3 + $0x338] sm:$0xff]
        %v479 = vld [vmem:[#allocation3 + $0x340] sm:$0xff]
        %v480 = vld [vmem:[#allocation3 + $0x348] sm:$0xff]
        %v481 = vld [vmem:[#allocation3 + $0x350] sm:$0xff]
        %v482 = vld [vmem:[#allocation3 + $0x358] sm:$0xff]
        %v483 = vld [vmem:[#allocation3 + $0x360] sm:$0xff]
        %v484 = vld [vmem:[#allocation3 + $0x368] sm:$0xff]
        %v485 = vld [vmem:[#allocation3 + $0x370] sm:$0xff]
        %v486 = vld [vmem:[#allocation3 + $0x378] sm:$0xff]
        %v487 = vld [vmem:[#allocation3 + $0x380] sm:$0xff]
        %v488 = vld [vmem:[#allocation3 + $0x388] sm:$0xff]
        %v489 = vld [vmem:[#allocation3 + $0x390] sm:$0xff]
        %v490 = vld [vmem:[#allocation3 + $0x398] sm:$0xff]
        %v491 = vld [vmem:[#allocation3 + $0x3a0] sm:$0xff]
        %v492 = vld [vmem:[#allocation3 + $0x3a8] sm:$0xff]
        %v493 = vld [vmem:[#allocation3 + $0x3b0] sm:$0xff]
        %v494 = vld [vmem:[#allocation3 + $0x3b8] sm:$0xff]
        %v495 = vld [vmem:[#allocation3 + $0x3c0] sm:$0xff]
        %v496 = vld [vmem:[#allocation3 + $0x3c8] sm:$0xff]
        %v497 = vld [vmem:[#allocation3 + $0x3d0] sm:$0xff]
        %v498 = vld [vmem:[#allocation3 + $0x3d8] sm:$0xff]
        %v499 = vld [vmem:[#allocation3 + $0x3e0] sm:$0xff]
        %v500 = vld [vmem:[#allocation3 + $0x3e8] sm:$0xff]
        %v501 = vld [vmem:[#allocation3 + $0x3f0] sm:$0xff]
        %v502 = vld [vmem:[#allocation3 + $0x3f8] sm:$0xff]
        %v503 = vpack.c.bf16 %v379, %v375
        %v504 = vpack.c.bf16 %v380, %v376
        %v505 = vpack.c.bf16 %v381, %v377
        %v506 = vpack.c.bf16 %v382, %v378
        %v507 = vpack.c.bf16 %v387, %v383
        %v508 = vpack.c.bf16 %v388, %v384
        %v509 = vpack.c.bf16 %v389, %v385
        %v510 = vpack.c.bf16 %v390, %v386
        %v511 = vpack.c.bf16 %v395, %v391
        %v512 = vpack.c.bf16 %v396, %v392
        %v513 = vpack.c.bf16 %v397, %v393
        %v514 = vpack.c.bf16 %v398, %v394
        %v515 = vpack.c.bf16 %v403, %v399
        %v516 = vpack.c.bf16 %v404, %v400
        %v517 = vpack.c.bf16 %v405, %v401
        %v518 = vpack.c.bf16 %v406, %v402
        %v519 = vpack.c.bf16 %v411, %v407
        %v520 = vpack.c.bf16 %v412, %v408
        %v521 = vpack.c.bf16 %v413, %v409
        %v522 = vpack.c.bf16 %v414, %v410
        %v523 = vpack.c.bf16 %v419, %v415
        %v524 = vpack.c.bf16 %v420, %v416
        %v525 = vpack.c.bf16 %v421, %v417
        %v526 = vpack.c.bf16 %v422, %v418
        %v527 = vpack.c.bf16 %v427, %v423
        %v528 = vpack.c.bf16 %v428, %v424
        %v529 = vpack.c.bf16 %v429, %v425
        %v530 = vpack.c.bf16 %v430, %v426
        %v531 = vpack.c.bf16 %v435, %v431
        %v532 = vpack.c.bf16 %v436, %v432
        %v533 = vpack.c.bf16 %v437, %v433
        %v534 = vpack.c.bf16 %v438, %v434
        %v535 = vpack.c.bf16 %v443, %v439
        %v536 = vpack.c.bf16 %v444, %v440
        %v537 = vpack.c.bf16 %v445, %v441
        %v538 = vpack.c.bf16 %v446, %v442
        %v539 = vpack.c.bf16 %v451, %v447
        %v540 = vpack.c.bf16 %v452, %v448
        %v541 = vpack.c.bf16 %v453, %v449
        %v542 = vpack.c.bf16 %v454, %v450
        %v543 = vpack.c.bf16 %v459, %v455
        %v544 = vpack.c.bf16 %v460, %v456
        %v545 = vpack.c.bf16 %v461, %v457
        %v546 = vpack.c.bf16 %v462, %v458
        %v547 = vpack.c.bf16 %v467, %v463
        %v548 = vpack.c.bf16 %v468, %v464
        %v549 = vpack.c.bf16 %v469, %v465
        %v550 = vpack.c.bf16 %v470, %v466
        %v551 = vpack.c.bf16 %v475, %v471
        %v552 = vpack.c.bf16 %v476, %v472
        %v553 = vpack.c.bf16 %v477, %v473
        %v554 = vpack.c.bf16 %v478, %v474
        %v555 = vpack.c.bf16 %v483, %v479
        %v556 = vpack.c.bf16 %v484, %v480
        %v557 = vpack.c.bf16 %v485, %v481
        %v558 = vpack.c.bf16 %v486, %v482
        %v559 = vpack.c.bf16 %v491, %v487
        %v560 = vpack.c.bf16 %v492, %v488
        %v561 = vpack.c.bf16 %v493, %v489
        %v562 = vpack.c.bf16 %v494, %v490
        %v563 = vpack.c.bf16 %v499, %v495
        %v564 = vpack.c.bf16 %v500, %v496
        %v565 = vpack.c.bf16 %v501, %v497
        %v566 = vpack.c.bf16 %v502, %v498
        %v567 = vld [vmem:[%s287] sm:$0xf]
        %v568 = vld [vmem:[%s287 + $0x4] sm:$0xf]
        %v569 = vld [vmem:[%s287 + $0x8] sm:$0xf]
        %v570 = vld [vmem:[%s287 + $0xc] sm:$0xf]
        %v571 = vld [vmem:[%s287 + $0x10] sm:$0xf]
        %v572 = vld [vmem:[%s287 + $0x14] sm:$0xf]
        %v573 = vld [vmem:[%s287 + $0x18] sm:$0xf]
        %v574 = vld [vmem:[%s287 + $0x1c] sm:$0xf]
        %v575 = vld [vmem:[%s287 + $0x20] sm:$0xf]
        %v576 = vld [vmem:[%s287 + $0x24] sm:$0xf]
        %v577 = vld [vmem:[%s287 + $0x28] sm:$0xf]
        %v578 = vld [vmem:[%s287 + $0x2c] sm:$0xf]
        %v579 = vld [vmem:[%s287 + $0x30] sm:$0xf]
        %v580 = vld [vmem:[%s287 + $0x34] sm:$0xf]
        %v581 = vld [vmem:[%s287 + $0x38] sm:$0xf]
        %v582 = vld [vmem:[%s287 + $0x3c] sm:$0xf]
        %v583 = vld [vmem:[%s287 + $0x40] sm:$0xf]
        %v584 = vld [vmem:[%s287 + $0x44] sm:$0xf]
        %v585 = vld [vmem:[%s287 + $0x48] sm:$0xf]
        %v586 = vld [vmem:[%s287 + $0x4c] sm:$0xf]
        %v587 = vld [vmem:[%s287 + $0x50] sm:$0xf]
        %v588 = vld [vmem:[%s287 + $0x54] sm:$0xf]
        %v589 = vld [vmem:[%s287 + $0x58] sm:$0xf]
        %v590 = vld [vmem:[%s287 + $0x5c] sm:$0xf]
        %v591 = vld [vmem:[%s287 + $0x60] sm:$0xf]
        %v592 = vld [vmem:[%s287 + $0x64] sm:$0xf]
        %v593 = vld [vmem:[%s287 + $0x68] sm:$0xf]
        %v594 = vld [vmem:[%s287 + $0x6c] sm:$0xf]
        %v595 = vld [vmem:[%s287 + $0x70] sm:$0xf]
        %v596 = vld [vmem:[%s287 + $0x74] sm:$0xf]
        %v597 = vld [vmem:[%s287 + $0x78] sm:$0xf]
        %v598 = vld [vmem:[%s287 + $0x7c] sm:$0xf]
        %v599 = vld [vmem:[%s287 + $0x80] sm:$0xf]
        %v600 = vld [vmem:[%s287 + $0x84] sm:$0xf]
        %v601 = vld [vmem:[%s287 + $0x88] sm:$0xf]
        %v602 = vld [vmem:[%s287 + $0x8c] sm:$0xf]
        %v603 = vld [vmem:[%s287 + $0x90] sm:$0xf]
        %v604 = vld [vmem:[%s287 + $0x94] sm:$0xf]
        %v605 = vld [vmem:[%s287 + $0x98] sm:$0xf]
        %v606 = vld [vmem:[%s287 + $0x9c] sm:$0xf]
        %v607 = vld [vmem:[%s287 + $0xa0] sm:$0xf]
        %v608 = vld [vmem:[%s287 + $0xa4] sm:$0xf]
        %v609 = vld [vmem:[%s287 + $0xa8] sm:$0xf]
        %v610 = vld [vmem:[%s287 + $0xac] sm:$0xf]
        %v611 = vld [vmem:[%s287 + $0xb0] sm:$0xf]
        %v612 = vld [vmem:[%s287 + $0xb4] sm:$0xf]
        %v613 = vld [vmem:[%s287 + $0xb8] sm:$0xf]
        %v614 = vld [vmem:[%s287 + $0xbc] sm:$0xf]
        %v615 = vld [vmem:[%s287 + $0xc0] sm:$0xf]
        %v616 = vld [vmem:[%s287 + $0xc4] sm:$0xf]
        %v617 = vld [vmem:[%s287 + $0xc8] sm:$0xf]
        %v618 = vld [vmem:[%s287 + $0xcc] sm:$0xf]
        %v619 = vld [vmem:[%s287 + $0xd0] sm:$0xf]
        %v620 = vld [vmem:[%s287 + $0xd4] sm:$0xf]
        %v621 = vld [vmem:[%s287 + $0xd8] sm:$0xf]
        %v622 = vld [vmem:[%s287 + $0xdc] sm:$0xf]
        %v623 = vld [vmem:[%s287 + $0xe0] sm:$0xf]
        %v624 = vld [vmem:[%s287 + $0xe4] sm:$0xf]
        %v625 = vld [vmem:[%s287 + $0xe8] sm:$0xf]
        %v626 = vld [vmem:[%s287 + $0xec] sm:$0xf]
        %v627 = vld [vmem:[%s287 + $0xf0] sm:$0xf]
        %v628 = vld [vmem:[%s287 + $0xf4] sm:$0xf]
        %v629 = vld [vmem:[%s287 + $0xf8] sm:$0xf]
        %v630 = vld [vmem:[%s287 + $0xfc] sm:$0xf]
        %v695 = vunpack.c.l.b16 %v567
        %v696 = vunpack.c.l.b16 %v568
        %v697 = vunpack.c.l.b16 %v569
        %v698 = vunpack.c.l.b16 %v570
        %v699 = vunpack.c.l.b16 %v571
        %v700 = vunpack.c.l.b16 %v572
        %v701 = vunpack.c.l.b16 %v573
        %v702 = vunpack.c.l.b16 %v574
        %v703 = vunpack.c.l.b16 %v575
        %v704 = vunpack.c.l.b16 %v576
        %v705 = vunpack.c.l.b16 %v577
        %v706 = vunpack.c.l.b16 %v578
        %v707 = vunpack.c.l.b16 %v579
        %v708 = vunpack.c.l.b16 %v580
        %v709 = vunpack.c.l.b16 %v581
        %v710 = vunpack.c.l.b16 %v582
        %v711 = vunpack.c.l.b16 %v583
        %v712 = vunpack.c.l.b16 %v584
        %v713 = vunpack.c.l.b16 %v585
        %v714 = vunpack.c.l.b16 %v586
        %v715 = vunpack.c.l.b16 %v587
        %v716 = vunpack.c.l.b16 %v588
        %v717 = vunpack.c.l.b16 %v589
        %v718 = vunpack.c.l.b16 %v590
        %v719 = vunpack.c.l.b16 %v591
        %v720 = vunpack.c.l.b16 %v592
        %v721 = vunpack.c.l.b16 %v593
        %v722 = vunpack.c.l.b16 %v594
        %v723 = vunpack.c.l.b16 %v595
        %v724 = vunpack.c.l.b16 %v596
        %v725 = vunpack.c.l.b16 %v597
        %v726 = vunpack.c.l.b16 %v598
        %v727 = vunpack.c.l.b16 %v599
        %v728 = vunpack.c.l.b16 %v600
        %v729 = vunpack.c.l.b16 %v601
        %v730 = vunpack.c.l.b16 %v602
        %v731 = vunpack.c.l.b16 %v603
        %v732 = vunpack.c.l.b16 %v604
        %v733 = vunpack.c.l.b16 %v605
        %v734 = vunpack.c.l.b16 %v606
        %v735 = vunpack.c.l.b16 %v607
        %v736 = vunpack.c.l.b16 %v608
        %v737 = vunpack.c.l.b16 %v609
        %v738 = vunpack.c.l.b16 %v610
        %v739 = vunpack.c.l.b16 %v611
        %v740 = vunpack.c.l.b16 %v612
        %v741 = vunpack.c.l.b16 %v613
        %v742 = vunpack.c.l.b16 %v614
        %v743 = vunpack.c.l.b16 %v615
        %v744 = vunpack.c.l.b16 %v616
        %v745 = vunpack.c.l.b16 %v617
        %v746 = vunpack.c.l.b16 %v618
        %v747 = vunpack.c.l.b16 %v619
        %v748 = vunpack.c.l.b16 %v620
        %v749 = vunpack.c.l.b16 %v621
        %v750 = vunpack.c.l.b16 %v622
        %v751 = vunpack.c.l.b16 %v623
        %v752 = vunpack.c.l.b16 %v624
        %v753 = vunpack.c.l.b16 %v625
        %v754 = vunpack.c.l.b16 %v626
        %v755 = vunpack.c.l.b16 %v627
        %v756 = vunpack.c.l.b16 %v628
        %v757 = vunpack.c.l.b16 %v629
        %v758 = vunpack.c.l.b16 %v630
        %v759 = vpack.c.b16 %v696, %v695
        %v760 = vpack.c.b16 %v698, %v697
        %v761 = vpack.c.b16 %v700, %v699
        %v762 = vpack.c.b16 %v702, %v701
        %v763 = vpack.c.b16 %v704, %v703
        %v764 = vpack.c.b16 %v706, %v705
        %v765 = vpack.c.b16 %v708, %v707
        %v766 = vpack.c.b16 %v710, %v709
        %v767 = vpack.c.b16 %v712, %v711
        %v768 = vpack.c.b16 %v714, %v713
        %v769 = vpack.c.b16 %v716, %v715
        %v770 = vpack.c.b16 %v718, %v717
        %v771 = vpack.c.b16 %v720, %v719
        %v772 = vpack.c.b16 %v722, %v721
        %v773 = vpack.c.b16 %v724, %v723
        %v774 = vpack.c.b16 %v726, %v725
        %v775 = vpack.c.b16 %v728, %v727
        %v776 = vpack.c.b16 %v730, %v729
        %v777 = vpack.c.b16 %v732, %v731
        %v778 = vpack.c.b16 %v734, %v733
        %v779 = vpack.c.b16 %v736, %v735
        %v780 = vpack.c.b16 %v738, %v737
        %v781 = vpack.c.b16 %v740, %v739
        %v782 = vpack.c.b16 %v742, %v741
        %v783 = vpack.c.b16 %v744, %v743
        %v784 = vpack.c.b16 %v746, %v745
        %v785 = vpack.c.b16 %v748, %v747
        %v786 = vpack.c.b16 %v750, %v749
        %v787 = vpack.c.b16 %v752, %v751
        %v788 = vpack.c.b16 %v754, %v753
        %v789 = vpack.c.b16 %v756, %v755
        %v790 = vpack.c.b16 %v758, %v757
        %823 = vmatprep.subr.bf16.mxu0 0
        %824 = vmatpush1.bf16.msra.mxu0 %v759
        %825 = vmatprep.subr.bf16.mxu0 0
        %826 = vmatpush1.bf16.msra.mxu0 %v760
        %827 = vmatprep.subr.bf16.mxu0 0
        %828 = vmatpush1.bf16.msra.mxu0 %v761
        %829 = vmatprep.subr.bf16.mxu0 0
        %830 = vmatpush1.bf16.msra.mxu0 %v762
        %831 = vmatprep.subr.bf16.mxu0 0
        %832 = vmatpush1.bf16.msra.mxu0 %v763
        %833 = vmatprep.subr.bf16.mxu0 0
        %834 = vmatpush1.bf16.msra.mxu0 %v764
        %835 = vmatprep.subr.bf16.mxu0 0
        %836 = vmatpush1.bf16.msra.mxu0 %v765
        %837 = vmatprep.subr.bf16.mxu0 0
        %838 = vmatpush1.bf16.msra.mxu0 %v766
        %839 = vmatprep.subr.bf16.mxu0 0
        %840 = vmatpush1.bf16.msra.mxu0 %v767
        %841 = vmatprep.subr.bf16.mxu0 0
        %842 = vmatpush1.bf16.msra.mxu0 %v768
        %843 = vmatprep.subr.bf16.mxu0 0
        %844 = vmatpush1.bf16.msra.mxu0 %v769
        %845 = vmatprep.subr.bf16.mxu0 0
        %846 = vmatpush1.bf16.msra.mxu0 %v770
        %847 = vmatprep.subr.bf16.mxu0 0
        %848 = vmatpush1.bf16.msra.mxu0 %v771
        %849 = vmatprep.subr.bf16.mxu0 0
        %850 = vmatpush1.bf16.msra.mxu0 %v772
        %851 = vmatprep.subr.bf16.mxu0 0
        %852 = vmatpush1.bf16.msra.mxu0 %v773
        %853 = vmatprep.subr.bf16.mxu0 0
        %854 = vmatpush1.bf16.msra.mxu0 %v774
        %855 = vmatprep.mubr.bf16.mxu0 %v504
        %856 = vmatmul.mubr.bf16.gmra.mrb[0].mxu0 %v503
        %v857 = vpop.f32.mrb[0].mxu0
        %v858 = vadd.f32 0.0, %v857
        %v859 = vpop.f32.mrb[0].mxu0
        %v860 = vpop.f32.mrb[0].mxu0
        %v861 = vadd.f32 0.0, %v860
        %v862 = vpop.f32.mrb[0].mxu0
        %863 = vmatprep.mubr.bf16.mxu0 %v508
        %864 = vmatmul.mubr.bf16.gmra.mrb[0].mxu0 %v507
        %v865 = vpop.f32.mrb[0].mxu0
        %v866 = vadd.f32 0.0, %v865
        %v867 = vpop.f32.mrb[0].mxu0
        %v868 = vpop.f32.mrb[0].mxu0
        %v869 = vadd.f32 0.0, %v868
        %v870 = vpop.f32.mrb[0].mxu0
        %871 = vmatprep.mubr.bf16.mxu0 %v512
        %872 = vmatmul.mubr.bf16.gmra.mrb[0].mxu0 %v511
        %v873 = vpop.f32.mrb[0].mxu0
        %v874 = vadd.f32 0.0, %v873
        %v875 = vpop.f32.mrb[0].mxu0
        %v876 = vpop.f32.mrb[0].mxu0
        %v877 = vadd.f32 0.0, %v876
        %v878 = vpop.f32.mrb[0].mxu0
        %879 = vmatprep.mubr.bf16.mxu0 %v516
        %880 = vmatmul.mubr.bf16.gmra.mrb[0].mxu0 %v515
        %v881 = vpop.f32.mrb[0].mxu0
        %v882 = vadd.f32 0.0, %v881
        %v883 = vpop.f32.mrb[0].mxu0
        %v884 = vpop.f32.mrb[0].mxu0
        %v885 = vadd.f32 0.0, %v884
        %v886 = vpop.f32.mrb[0].mxu0
        %887 = vmatprep.mubr.bf16.mxu0 %v520
        %888 = vmatmul.mubr.bf16.gmra.mrb[0].mxu0 %v519
        %v889 = vpop.f32.mrb[0].mxu0
        %v890 = vadd.f32 0.0, %v889
        %v891 = vpop.f32.mrb[0].mxu0
        %v892 = vpop.f32.mrb[0].mxu0
        %v893 = vadd.f32 0.0, %v892
        %v894 = vpop.f32.mrb[0].mxu0
        %895 = vmatprep.mubr.bf16.mxu0 %v524
        %896 = vmatmul.mubr.bf16.gmra.mrb[0].mxu0 %v523
        %v897 = vpop.f32.mrb[0].mxu0
        %v898 = vadd.f32 0.0, %v897
        %v899 = vpop.f32.mrb[0].mxu0
        %v900 = vpop.f32.mrb[0].mxu0
        %v901 = vadd.f32 0.0, %v900
        %v902 = vpop.f32.mrb[0].mxu0
        %903 = vmatprep.mubr.bf16.mxu0 %v528
        %904 = vmatmul.mubr.bf16.gmra.mrb[0].mxu0 %v527
        %v905 = vpop.f32.mrb[0].mxu0
        %v906 = vadd.f32 0.0, %v905
        %v907 = vpop.f32.mrb[0].mxu0
        %v908 = vpop.f32.mrb[0].mxu0
        %v909 = vadd.f32 0.0, %v908
        %v910 = vpop.f32.mrb[0].mxu0
        %911 = vmatprep.mubr.bf16.mxu0 %v532
        %912 = vmatmul.mubr.bf16.gmra.mrb[0].mxu0 %v531
        %v913 = vpop.f32.mrb[0].mxu0
        %v914 = vadd.f32 0.0, %v913
        %v915 = vpop.f32.mrb[0].mxu0
        %v916 = vpop.f32.mrb[0].mxu0
        %v917 = vadd.f32 0.0, %v916
        %v918 = vpop.f32.mrb[0].mxu0
        %919 = vmatprep.mubr.bf16.mxu0 %v536
        %920 = vmatmul.mubr.bf16.gmra.mrb[0].mxu0 %v535
        %v921 = vpop.f32.mrb[0].mxu0
        %v922 = vadd.f32 0.0, %v921
        %v923 = vpop.f32.mrb[0].mxu0
        %v924 = vpop.f32.mrb[0].mxu0
        %v925 = vadd.f32 0.0, %v924
        %v926 = vpop.f32.mrb[0].mxu0
        %927 = vmatprep.mubr.bf16.mxu0 %v540
        %928 = vmatmul.mubr.bf16.gmra.mrb[0].mxu0 %v539
        %v929 = vpop.f32.mrb[0].mxu0
        %v930 = vadd.f32 0.0, %v929
        %v931 = vpop.f32.mrb[0].mxu0
        %v932 = vpop.f32.mrb[0].mxu0
        %v933 = vadd.f32 0.0, %v932
        %v934 = vpop.f32.mrb[0].mxu0
        %935 = vmatprep.mubr.bf16.mxu0 %v544
        %936 = vmatmul.mubr.bf16.gmra.mrb[0].mxu0 %v543
        %v937 = vpop.f32.mrb[0].mxu0
        %v938 = vadd.f32 0.0, %v937
        %v939 = vpop.f32.mrb[0].mxu0
        %v940 = vpop.f32.mrb[0].mxu0
        %v941 = vadd.f32 0.0, %v940
        %v942 = vpop.f32.mrb[0].mxu0
        %943 = vmatprep.mubr.bf16.mxu0 %v548
        %944 = vmatmul.mubr.bf16.gmra.mrb[0].mxu0 %v547
        %v945 = vpop.f32.mrb[0].mxu0
        %v946 = vadd.f32 0.0, %v945
        %v947 = vpop.f32.mrb[0].mxu0
        %v948 = vpop.f32.mrb[0].mxu0
        %v949 = vadd.f32 0.0, %v948
        %v950 = vpop.f32.mrb[0].mxu0
        %951 = vmatprep.mubr.bf16.mxu0 %v552
        %952 = vmatmul.mubr.bf16.gmra.mrb[0].mxu0 %v551
        %v953 = vpop.f32.mrb[0].mxu0
        %v954 = vadd.f32 0.0, %v953
        %v955 = vpop.f32.mrb[0].mxu0
        %v956 = vpop.f32.mrb[0].mxu0
        %v957 = vadd.f32 0.0, %v956
        %v958 = vpop.f32.mrb[0].mxu0
        %959 = vmatprep.mubr.bf16.mxu0 %v556
        %960 = vmatmul.mubr.bf16.gmra.mrb[0].mxu0 %v555
        %v961 = vpop.f32.mrb[0].mxu0
        %v962 = vadd.f32 0.0, %v961
        %v963 = vpop.f32.mrb[0].mxu0
        %v964 = vpop.f32.mrb[0].mxu0
        %v965 = vadd.f32 0.0, %v964
        %v966 = vpop.f32.mrb[0].mxu0
        %967 = vmatprep.mubr.bf16.mxu0 %v560
        %968 = vmatmul.mubr.bf16.gmra.mrb[0].mxu0 %v559
        %v969 = vpop.f32.mrb[0].mxu0
        %v970 = vadd.f32 0.0, %v969
        %v971 = vpop.f32.mrb[0].mxu0
        %v972 = vpop.f32.mrb[0].mxu0
        %v973 = vadd.f32 0.0, %v972
        %v974 = vpop.f32.mrb[0].mxu0
        %975 = vmatprep.mubr.bf16.mxu0 %v564
        %976 = vmatmul.mubr.bf16.gmra.mrb[0].mxu0 %v563
        %v977 = vpop.f32.mrb[0].mxu0
        %v978 = vadd.f32 0.0, %v977
        %v979 = vpop.f32.mrb[0].mxu0
        %v980 = vpop.f32.mrb[0].mxu0
        %v981 = vadd.f32 0.0, %v980
        %v982 = vpop.f32.mrb[0].mxu0
        %983 = vdwg.mxu0
        %984 = vmatprep.subr.bf16.mxu0 0
        %985 = vmatpush1.bf16.msra.mxu0 %v775
        %986 = vmatprep.subr.bf16.mxu0 0
        %987 = vmatpush1.bf16.msra.mxu0 %v776
        %988 = vmatprep.subr.bf16.mxu0 0
        %989 = vmatpush1.bf16.msra.mxu0 %v777
        %990 = vmatprep.subr.bf16.mxu0 0
        %991 = vmatpush1.bf16.msra.mxu0 %v778
        %992 = vmatprep.subr.bf16.mxu0 0
        %993 = vmatpush1.bf16.msra.mxu0 %v779
        %994 = vmatprep.subr.bf16.mxu0 0
        %995 = vmatpush1.bf16.msra.mxu0 %v780
        %996 = vmatprep.subr.bf16.mxu0 0
        %997 = vmatpush1.bf16.msra.mxu0 %v781
        %998 = vmatprep.subr.bf16.mxu0 0
        %999 = vmatpush1.bf16.msra.mxu0 %v782
        %1000 = vmatprep.subr.bf16.mxu0 0
        %1001 = vmatpush1.bf16.msra.mxu0 %v783
        %1002 = vmatprep.subr.bf16.mxu0 0
        %1003 = vmatpush1.bf16.msra.mxu0 %v784
        %1004 = vmatprep.subr.bf16.mxu0 0
        %1005 = vmatpush1.bf16.msra.mxu0 %v785
        %1006 = vmatprep.subr.bf16.mxu0 0
        %1007 = vmatpush1.bf16.msra.mxu0 %v786
        %1008 = vmatprep.subr.bf16.mxu0 0
        %1009 = vmatpush1.bf16.msra.mxu0 %v787
        %1010 = vmatprep.subr.bf16.mxu0 0
        %1011 = vmatpush1.bf16.msra.mxu0 %v788
        %1012 = vmatprep.subr.bf16.mxu0 0
        %1013 = vmatpush1.bf16.msra.mxu0 %v789
        %1014 = vmatprep.subr.bf16.mxu0 0
        %1015 = vmatpush1.bf16.msra.mxu0 %v790
        %1016 = vmatprep.mubr.bf16.mxu0 %v506
        %1017 = vmatmul.mubr.bf16.gmra.mrb[0].mxu0 %v505
        %v1018 = vpop.f32.mrb[0].mxu0
        %v1019 = vadd.f32 %v858, %v1018
        %v1020 = vpop.f32.mrb[0].mxu0
        %v1021 = vpop.f32.mrb[0].mxu0
        %v1022 = vadd.f32 %v861, %v1021
        %v1023 = vpop.f32.mrb[0].mxu0
        %1024 = vmatprep.mubr.bf16.mxu0 %v510
        %1025 = vmatmul.mubr.bf16.gmra.mrb[0].mxu0 %v509
        %v1026 = vpop.f32.mrb[0].mxu0
        %v1027 = vadd.f32 %v866, %v1026
        %v1028 = vpop.f32.mrb[0].mxu0
        %v1029 = vpop.f32.mrb[0].mxu0
        %v1030 = vadd.f32 %v869, %v1029
        %v1031 = vpop.f32.mrb[0].mxu0
        %1032 = vmatprep.mubr.bf16.mxu0 %v514
        %1033 = vmatmul.mubr.bf16.gmra.mrb[0].mxu0 %v513
        %v1034 = vpop.f32.mrb[0].mxu0
        %v1035 = vadd.f32 %v874, %v1034
        %v1036 = vpop.f32.mrb[0].mxu0
        %v1037 = vpop.f32.mrb[0].mxu0
        %v1038 = vadd.f32 %v877, %v1037
        %v1039 = vpop.f32.mrb[0].mxu0
        %1040 = vmatprep.mubr.bf16.mxu0 %v518
        %1041 = vmatmul.mubr.bf16.gmra.mrb[0].mxu0 %v517
        %v1042 = vpop.f32.mrb[0].mxu0
        %v1043 = vadd.f32 %v882, %v1042
        %v1044 = vpop.f32.mrb[0].mxu0
        %v1045 = vpop.f32.mrb[0].mxu0
        %v1046 = vadd.f32 %v885, %v1045
        %v1047 = vpop.f32.mrb[0].mxu0
        %1048 = vmatprep.mubr.bf16.mxu0 %v522
        %1049 = vmatmul.mubr.bf16.gmra.mrb[0].mxu0 %v521
        %v1050 = vpop.f32.mrb[0].mxu0
        %v1051 = vadd.f32 %v890, %v1050
        %v1052 = vpop.f32.mrb[0].mxu0
        %v1053 = vpop.f32.mrb[0].mxu0
        %v1054 = vadd.f32 %v893, %v1053
        %v1055 = vpop.f32.mrb[0].mxu0
        %1056 = vmatprep.mubr.bf16.mxu0 %v526
        %1057 = vmatmul.mubr.bf16.gmra.mrb[0].mxu0 %v525
        %v1058 = vpop.f32.mrb[0].mxu0
        %v1059 = vadd.f32 %v898, %v1058
        %v1060 = vpop.f32.mrb[0].mxu0
        %v1061 = vpop.f32.mrb[0].mxu0
        %v1062 = vadd.f32 %v901, %v1061
        %v1063 = vpop.f32.mrb[0].mxu0
        %1064 = vmatprep.mubr.bf16.mxu0 %v530
        %1065 = vmatmul.mubr.bf16.gmra.mrb[0].mxu0 %v529
        %v1066 = vpop.f32.mrb[0].mxu0
        %v1067 = vadd.f32 %v906, %v1066
        %v1068 = vpop.f32.mrb[0].mxu0
        %v1069 = vpop.f32.mrb[0].mxu0
        %v1070 = vadd.f32 %v909, %v1069
        %v1071 = vpop.f32.mrb[0].mxu0
        %1072 = vmatprep.mubr.bf16.mxu0 %v534
        %1073 = vmatmul.mubr.bf16.gmra.mrb[0].mxu0 %v533
        %v1074 = vpop.f32.mrb[0].mxu0
        %v1075 = vadd.f32 %v914, %v1074
        %v1076 = vpop.f32.mrb[0].mxu0
        %v1077 = vpop.f32.mrb[0].mxu0
        %v1078 = vadd.f32 %v917, %v1077
        %v1079 = vpop.f32.mrb[0].mxu0
        %1080 = vmatprep.mubr.bf16.mxu0 %v538
        %1081 = vmatmul.mubr.bf16.gmra.mrb[0].mxu0 %v537
        %v1082 = vpop.f32.mrb[0].mxu0
        %v1083 = vadd.f32 %v922, %v1082
        %v1084 = vpop.f32.mrb[0].mxu0
        %v1085 = vpop.f32.mrb[0].mxu0
        %v1086 = vadd.f32 %v925, %v1085
        %v1087 = vpop.f32.mrb[0].mxu0
        %1088 = vmatprep.mubr.bf16.mxu0 %v542
        %1089 = vmatmul.mubr.bf16.gmra.mrb[0].mxu0 %v541
        %v1090 = vpop.f32.mrb[0].mxu0
        %v1091 = vadd.f32 %v930, %v1090
        %v1092 = vpop.f32.mrb[0].mxu0
        %v1093 = vpop.f32.mrb[0].mxu0
        %v1094 = vadd.f32 %v933, %v1093
        %v1095 = vpop.f32.mrb[0].mxu0
        %1096 = vmatprep.mubr.bf16.mxu0 %v546
        %1097 = vmatmul.mubr.bf16.gmra.mrb[0].mxu0 %v545
        %v1098 = vpop.f32.mrb[0].mxu0
        %v1099 = vadd.f32 %v938, %v1098
        %v1100 = vpop.f32.mrb[0].mxu0
        %v1101 = vpop.f32.mrb[0].mxu0
        %v1102 = vadd.f32 %v941, %v1101
        %v1103 = vpop.f32.mrb[0].mxu0
        %1104 = vmatprep.mubr.bf16.mxu0 %v550
        %1105 = vmatmul.mubr.bf16.gmra.mrb[0].mxu0 %v549
        %v1106 = vpop.f32.mrb[0].mxu0
        %v1107 = vadd.f32 %v946, %v1106
        %v1108 = vpop.f32.mrb[0].mxu0
        %v1109 = vpop.f32.mrb[0].mxu0
        %v1110 = vadd.f32 %v949, %v1109
        %v1111 = vpop.f32.mrb[0].mxu0
        %1112 = vmatprep.mubr.bf16.mxu0 %v554
        %1113 = vmatmul.mubr.bf16.gmra.mrb[0].mxu0 %v553
        %v1114 = vpop.f32.mrb[0].mxu0
        %v1115 = vadd.f32 %v954, %v1114
        %v1116 = vpop.f32.mrb[0].mxu0
        %v1117 = vpop.f32.mrb[0].mxu0
        %v1118 = vadd.f32 %v957, %v1117
        %v1119 = vpop.f32.mrb[0].mxu0
        %1120 = vmatprep.mubr.bf16.mxu0 %v558
        %1121 = vmatmul.mubr.bf16.gmra.mrb[0].mxu0 %v557
        %v1122 = vpop.f32.mrb[0].mxu0
        %v1123 = vadd.f32 %v962, %v1122
        %v1124 = vpop.f32.mrb[0].mxu0
        %v1125 = vpop.f32.mrb[0].mxu0
        %v1126 = vadd.f32 %v965, %v1125
        %v1127 = vpop.f32.mrb[0].mxu0
        %1128 = vmatprep.mubr.bf16.mxu0 %v562
        %1129 = vmatmul.mubr.bf16.gmra.mrb[0].mxu0 %v561
        %v1130 = vpop.f32.mrb[0].mxu0
        %v1131 = vadd.f32 %v970, %v1130
        %v1132 = vpop.f32.mrb[0].mxu0
        %v1133 = vpop.f32.mrb[0].mxu0
        %v1134 = vadd.f32 %v973, %v1133
        %v1135 = vpop.f32.mrb[0].mxu0
        %1136 = vmatprep.mubr.bf16.mxu0 %v566
        %1137 = vmatmul.mubr.bf16.gmra.mrb[0].mxu0 %v565
        %v1138 = vpop.f32.mrb[0].mxu0
        %v1139 = vadd.f32 %v978, %v1138
        %v1140 = vpop.f32.mrb[0].mxu0
        %v1141 = vpop.f32.mrb[0].mxu0
        %v1142 = vadd.f32 %v981, %v1141
        %v1143 = vpop.f32.mrb[0].mxu0
        %1144 = vdwg.mxu0
        %v1145 = vadd.f32 %v1019, %v1022
        %v1146 = vadd.f32 %v1145, %v1027
        %v1147 = vadd.f32 %v1146, %v1030
        %v1148 = vadd.f32 %v1147, %v1035
        %v1149 = vadd.f32 %v1148, %v1038
        %v1150 = vadd.f32 %v1149, %v1043
        %v1151 = vadd.f32 %v1150, %v1046
        %v1152 = vadd.f32 %v1151, %v1051
        %v1153 = vadd.f32 %v1152, %v1054
        %v1154 = vadd.f32 %v1153, %v1059
        %v1155 = vadd.f32 %v1154, %v1062
        %v1156 = vadd.f32 %v1155, %v1067
        %v1157 = vadd.f32 %v1156, %v1070
        %v1158 = vadd.f32 %v1157, %v1075
        %v1159 = vadd.f32 %v1158, %v1078
        %v1160 = vadd.f32 %v1159, %v1083
        %v1161 = vadd.f32 %v1160, %v1086
        %v1162 = vadd.f32 %v1161, %v1091
        %v1163 = vadd.f32 %v1162, %v1094
        %v1164 = vadd.f32 %v1163, %v1099
        %v1165 = vadd.f32 %v1164, %v1102
        %v1166 = vadd.f32 %v1165, %v1107
        %v1167 = vadd.f32 %v1166, %v1110
        %v1168 = vadd.f32 %v1167, %v1115
        %v1169 = vadd.f32 %v1168, %v1118
        %v1170 = vadd.f32 %v1169, %v1123
        %v1171 = vadd.f32 %v1170, %v1126
        %v1172 = vadd.f32 %v1171, %v1131
        %v1173 = vadd.f32 %v1172, %v1134
        %v1174 = vadd.f32 %v1173, %v1139
        %v1175 = vadd.f32 %v1174, %v1142
        %v1176 = vrot.slane %v1175, 4
        %v1177 = vadd.f32 %v1175, %v1176
        %v1178 = vrot.slane %v1177, 2
        %v1179 = vadd.f32 %v1177, %v1178
        %v1180 = vrot.slane %v1179, 1
        %v1181 = vadd.f32 %v1179, %v1180
        %v1182 = vmul.f32 %v1181, 0.00390625
        %v1183 = vmul.f32 %v1019, %v1019
        %v1184 = vmul.f32 %v1022, %v1022
        %v1185 = vmul.f32 %v1027, %v1027
        %v1186 = vmul.f32 %v1030, %v1030
        %v1187 = vmul.f32 %v1035, %v1035
        %v1188 = vmul.f32 %v1038, %v1038
        %v1189 = vmul.f32 %v1043, %v1043
        %v1190 = vmul.f32 %v1046, %v1046
        %v1191 = vmul.f32 %v1051, %v1051
        %v1192 = vmul.f32 %v1054, %v1054
        %v1193 = vmul.f32 %v1059, %v1059
        %v1194 = vmul.f32 %v1062, %v1062
        %v1195 = vmul.f32 %v1067, %v1067
        %v1196 = vmul.f32 %v1070, %v1070
        %v1197 = vmul.f32 %v1075, %v1075
        %v1198 = vmul.f32 %v1078, %v1078
        %v1199 = vmul.f32 %v1083, %v1083
        %v1200 = vmul.f32 %v1086, %v1086
        %v1201 = vmul.f32 %v1091, %v1091
        %v1202 = vmul.f32 %v1094, %v1094
        %v1203 = vmul.f32 %v1099, %v1099
        %v1204 = vmul.f32 %v1102, %v1102
        %v1205 = vmul.f32 %v1107, %v1107
        %v1206 = vmul.f32 %v1110, %v1110
        %v1207 = vmul.f32 %v1115, %v1115
        %v1208 = vmul.f32 %v1118, %v1118
        %v1209 = vmul.f32 %v1123, %v1123
        %v1210 = vmul.f32 %v1126, %v1126
        %v1211 = vmul.f32 %v1131, %v1131
        %v1212 = vmul.f32 %v1134, %v1134
        %v1213 = vmul.f32 %v1139, %v1139
        %v1214 = vmul.f32 %v1142, %v1142
        %v1215 = vadd.f32 %v1183, %v1184
        %v1216 = vadd.f32 %v1215, %v1185
        %v1217 = vadd.f32 %v1216, %v1186
        %v1218 = vadd.f32 %v1217, %v1187
        %v1219 = vadd.f32 %v1218, %v1188
        %v1220 = vadd.f32 %v1219, %v1189
        %v1221 = vadd.f32 %v1220, %v1190
        %v1222 = vadd.f32 %v1221, %v1191
        %v1223 = vadd.f32 %v1222, %v1192
        %v1224 = vadd.f32 %v1223, %v1193
        %v1225 = vadd.f32 %v1224, %v1194
        %v1226 = vadd.f32 %v1225, %v1195
        %v1227 = vadd.f32 %v1226, %v1196
        %v1228 = vadd.f32 %v1227, %v1197
        %v1229 = vadd.f32 %v1228, %v1198
        %v1230 = vadd.f32 %v1229, %v1199
        %v1231 = vadd.f32 %v1230, %v1200
        %v1232 = vadd.f32 %v1231, %v1201
        %v1233 = vadd.f32 %v1232, %v1202
        %v1234 = vadd.f32 %v1233, %v1203
        %v1235 = vadd.f32 %v1234, %v1204
        %v1236 = vadd.f32 %v1235, %v1205
        %v1237 = vadd.f32 %v1236, %v1206
        %v1238 = vadd.f32 %v1237, %v1207
        %v1239 = vadd.f32 %v1238, %v1208
        %v1240 = vadd.f32 %v1239, %v1209
        %v1241 = vadd.f32 %v1240, %v1210
        %v1242 = vadd.f32 %v1241, %v1211
        %v1243 = vadd.f32 %v1242, %v1212
        %v1244 = vadd.f32 %v1243, %v1213
        %v1245 = vadd.f32 %v1244, %v1214
        %v1246 = vrot.slane %v1245, 4
        %v1247 = vadd.f32 %v1245, %v1246
        %v1248 = vrot.slane %v1247, 2
        %v1249 = vadd.f32 %v1247, %v1248
        %v1250 = vrot.slane %v1249, 1
        %v1251 = vadd.f32 %v1249, %v1250
        %v1252 = vmul.f32 %v1251, 0.00390625
        %v1253 = vmul.f32 %v1182, %v1182
        %v1254 = vsub.f32 %v1252, %v1253
        %v1255 = vmax.f32 %v1254, 0.0
        %v1256 = vadd.f32 %v1255, 1e-05
        %v1257 = vrsqrt.pop %v1256
        %v1258 = vld [vmem:[%s333] sm:$0x1]
        %v1259 = vmul.f32 %v1258, %v1257
        %v1260 = vld [vmem:[%s336] sm:$0x1]
        %v1261 = vmul.f32 %v1182, %v1259
        %v1262 = vsub.f32 %v1260, %v1261
        %v1264 = vlaneseq
        %v1265 = vshrl.u32 %v1264, 7
        %v1266 = vsub.s32 0, %v1265
        %v1267 = vrot.slane %v1259, %v1266
        %v1269 = vmul.f32 %v1019, %v1267
        %v1270 = vmul.f32 %v1022, %v1267
        %v1271 = vmul.f32 %v1027, %v1267
        %v1272 = vmul.f32 %v1030, %v1267
        %v1273 = vmul.f32 %v1035, %v1267
        %v1274 = vmul.f32 %v1038, %v1267
        %v1275 = vmul.f32 %v1043, %v1267
        %v1276 = vmul.f32 %v1046, %v1267
        %v1277 = vmul.f32 %v1051, %v1267
        %v1278 = vmul.f32 %v1054, %v1267
        %v1279 = vmul.f32 %v1059, %v1267
        %v1280 = vmul.f32 %v1062, %v1267
        %v1281 = vmul.f32 %v1067, %v1267
        %v1282 = vmul.f32 %v1070, %v1267
        %v1283 = vmul.f32 %v1075, %v1267
        %v1284 = vmul.f32 %v1078, %v1267
        %v1285 = vmul.f32 %v1083, %v1267
        %v1286 = vmul.f32 %v1086, %v1267
        %v1287 = vmul.f32 %v1091, %v1267
        %v1288 = vmul.f32 %v1094, %v1267
        %v1289 = vmul.f32 %v1099, %v1267
        %v1290 = vmul.f32 %v1102, %v1267
        %v1291 = vmul.f32 %v1107, %v1267
        %v1292 = vmul.f32 %v1110, %v1267
        %v1293 = vmul.f32 %v1115, %v1267
        %v1294 = vmul.f32 %v1118, %v1267
        %v1295 = vmul.f32 %v1123, %v1267
        %v1296 = vmul.f32 %v1126, %v1267
        %v1297 = vmul.f32 %v1131, %v1267
        %v1298 = vmul.f32 %v1134, %v1267
        %v1299 = vmul.f32 %v1139, %v1267
        %v1300 = vmul.f32 %v1142, %v1267
        %v1302 = vlaneseq
        %v1303 = vshrl.u32 %v1302, 7
        %v1304 = vsub.s32 0, %v1303
        %v1305 = vrot.slane %v1262, %v1304
        %v1307 = vadd.f32 %v1269, %v1305
        %v1308 = vadd.f32 %v1270, %v1305
        %v1309 = vadd.f32 %v1271, %v1305
        %v1310 = vadd.f32 %v1272, %v1305
        %v1311 = vadd.f32 %v1273, %v1305
        %v1312 = vadd.f32 %v1274, %v1305
        %v1313 = vadd.f32 %v1275, %v1305
        %v1314 = vadd.f32 %v1276, %v1305
        %v1315 = vadd.f32 %v1277, %v1305
        %v1316 = vadd.f32 %v1278, %v1305
        %v1317 = vadd.f32 %v1279, %v1305
        %v1318 = vadd.f32 %v1280, %v1305
        %v1319 = vadd.f32 %v1281, %v1305
        %v1320 = vadd.f32 %v1282, %v1305
        %v1321 = vadd.f32 %v1283, %v1305
        %v1322 = vadd.f32 %v1284, %v1305
        %v1323 = vadd.f32 %v1285, %v1305
        %v1324 = vadd.f32 %v1286, %v1305
        %v1325 = vadd.f32 %v1287, %v1305
        %v1326 = vadd.f32 %v1288, %v1305
        %v1327 = vadd.f32 %v1289, %v1305
        %v1328 = vadd.f32 %v1290, %v1305
        %v1329 = vadd.f32 %v1291, %v1305
        %v1330 = vadd.f32 %v1292, %v1305
        %v1331 = vadd.f32 %v1293, %v1305
        %v1332 = vadd.f32 %v1294, %v1305
        %v1333 = vadd.f32 %v1295, %v1305
        %v1334 = vadd.f32 %v1296, %v1305
        %v1335 = vadd.f32 %v1297, %v1305
        %v1336 = vadd.f32 %v1298, %v1305
        %v1337 = vadd.f32 %v1299, %v1305
        %v1338 = vadd.f32 %v1300, %v1305
        %v1339 = vmax.f32 %v1307, 0.0
        %v1340 = vmax.f32 %v1308, 0.0
        %v1341 = vmax.f32 %v1309, 0.0
        %v1342 = vmax.f32 %v1310, 0.0
        %v1343 = vmax.f32 %v1311, 0.0
        %v1344 = vmax.f32 %v1312, 0.0
        %v1345 = vmax.f32 %v1313, 0.0
        %v1346 = vmax.f32 %v1314, 0.0
        %v1347 = vmax.f32 %v1315, 0.0
        %v1348 = vmax.f32 %v1316, 0.0
        %v1349 = vmax.f32 %v1317, 0.0
        %v1350 = vmax.f32 %v1318, 0.0
        %v1351 = vmax.f32 %v1319, 0.0
        %v1352 = vmax.f32 %v1320, 0.0
        %v1353 = vmax.f32 %v1321, 0.0
        %v1354 = vmax.f32 %v1322, 0.0
        %v1355 = vmax.f32 %v1323, 0.0
        %v1356 = vmax.f32 %v1324, 0.0
        %v1357 = vmax.f32 %v1325, 0.0
        %v1358 = vmax.f32 %v1326, 0.0
        %v1359 = vmax.f32 %v1327, 0.0
        %v1360 = vmax.f32 %v1328, 0.0
        %v1361 = vmax.f32 %v1329, 0.0
        %v1362 = vmax.f32 %v1330, 0.0
        %v1363 = vmax.f32 %v1331, 0.0
        %v1364 = vmax.f32 %v1332, 0.0
        %v1365 = vmax.f32 %v1333, 0.0
        %v1366 = vmax.f32 %v1334, 0.0
        %v1367 = vmax.f32 %v1335, 0.0
        %v1368 = vmax.f32 %v1336, 0.0
        %v1369 = vmax.f32 %v1337, 0.0
        %v1370 = vmax.f32 %v1338, 0.0
        %v1371 = vpack.c.bf16 %v1340, %v1339
        %v1372 = vpack.c.bf16 %v1342, %v1341
        %v1373 = vpack.c.bf16 %v1344, %v1343
        %v1374 = vpack.c.bf16 %v1346, %v1345
        %v1375 = vpack.c.bf16 %v1348, %v1347
        %v1376 = vpack.c.bf16 %v1350, %v1349
        %v1377 = vpack.c.bf16 %v1352, %v1351
        %v1378 = vpack.c.bf16 %v1354, %v1353
        %v1379 = vpack.c.bf16 %v1356, %v1355
        %v1380 = vpack.c.bf16 %v1358, %v1357
        %v1381 = vpack.c.bf16 %v1360, %v1359
        %v1382 = vpack.c.bf16 %v1362, %v1361
        %v1383 = vpack.c.bf16 %v1364, %v1363
        %v1384 = vpack.c.bf16 %v1366, %v1365
        %v1385 = vpack.c.bf16 %v1368, %v1367
        %v1386 = vpack.c.bf16 %v1370, %v1369
        %v1387 = vld [vmem:[#allocation2] sm:$0xff]
        %v1388 = vld [vmem:[#allocation2 + $0x8] sm:$0xff]
        %v1389 = vld [vmem:[#allocation2 + $0x10] sm:$0xff]
        %v1390 = vld [vmem:[#allocation2 + $0x18] sm:$0xff]
        %v1391 = vld [vmem:[#allocation2 + $0x20] sm:$0xff]
        %v1392 = vld [vmem:[#allocation2 + $0x28] sm:$0xff]
        %v1393 = vld [vmem:[#allocation2 + $0x30] sm:$0xff]
        %v1394 = vld [vmem:[#allocation2 + $0x38] sm:$0xff]
        %v1395 = vld [vmem:[#allocation2 + $0x40] sm:$0xff]
        %v1396 = vld [vmem:[#allocation2 + $0x48] sm:$0xff]
        %v1397 = vld [vmem:[#allocation2 + $0x50] sm:$0xff]
        %v1398 = vld [vmem:[#allocation2 + $0x58] sm:$0xff]
        %v1399 = vld [vmem:[#allocation2 + $0x60] sm:$0xff]
        %v1400 = vld [vmem:[#allocation2 + $0x68] sm:$0xff]
        %v1401 = vld [vmem:[#allocation2 + $0x70] sm:$0xff]
        %v1402 = vld [vmem:[#allocation2 + $0x78] sm:$0xff]
        %v1403 = vld [vmem:[#allocation2 + $0x80] sm:$0xff]
        %v1404 = vld [vmem:[#allocation2 + $0x88] sm:$0xff]
        %v1405 = vld [vmem:[#allocation2 + $0x90] sm:$0xff]
        %v1406 = vld [vmem:[#allocation2 + $0x98] sm:$0xff]
        %v1407 = vld [vmem:[#allocation2 + $0xa0] sm:$0xff]
        %v1408 = vld [vmem:[#allocation2 + $0xa8] sm:$0xff]
        %v1409 = vld [vmem:[#allocation2 + $0xb0] sm:$0xff]
        %v1410 = vld [vmem:[#allocation2 + $0xb8] sm:$0xff]
        %v1411 = vld [vmem:[#allocation2 + $0xc0] sm:$0xff]
        %v1412 = vld [vmem:[#allocation2 + $0xc8] sm:$0xff]
        %v1413 = vld [vmem:[#allocation2 + $0xd0] sm:$0xff]
        %v1414 = vld [vmem:[#allocation2 + $0xd8] sm:$0xff]
        %v1415 = vld [vmem:[#allocation2 + $0xe0] sm:$0xff]
        %v1416 = vld [vmem:[#allocation2 + $0xe8] sm:$0xff]
        %v1417 = vld [vmem:[#allocation2 + $0xf0] sm:$0xff]
        %v1418 = vld [vmem:[#allocation2 + $0xf8] sm:$0xff]
        %v1419 = vld [vmem:[%s296] sm:$0xf]
        %v1420 = vld [vmem:[%s296 + $0x4] sm:$0xf]
        %v1421 = vld [vmem:[%s296 + $0x8] sm:$0xf]
        %v1422 = vld [vmem:[%s296 + $0xc] sm:$0xf]
        %v1423 = vld [vmem:[%s296 + $0x10] sm:$0xf]
        %v1424 = vld [vmem:[%s296 + $0x14] sm:$0xf]
        %v1425 = vld [vmem:[%s296 + $0x18] sm:$0xf]
        %v1426 = vld [vmem:[%s296 + $0x1c] sm:$0xf]
        %v1427 = vld [vmem:[%s296 + $0x20] sm:$0xf]
        %v1428 = vld [vmem:[%s296 + $0x24] sm:$0xf]
        %v1429 = vld [vmem:[%s296 + $0x28] sm:$0xf]
        %v1430 = vld [vmem:[%s296 + $0x2c] sm:$0xf]
        %v1431 = vld [vmem:[%s296 + $0x30] sm:$0xf]
        %v1432 = vld [vmem:[%s296 + $0x34] sm:$0xf]
        %v1433 = vld [vmem:[%s296 + $0x38] sm:$0xf]
        %v1434 = vld [vmem:[%s296 + $0x3c] sm:$0xf]
        %v1451 = vunpack.c.l.b16 %v1419
        %v1452 = vunpack.c.l.b16 %v1420
        %v1453 = vunpack.c.l.b16 %v1421
        %v1454 = vunpack.c.l.b16 %v1422
        %v1455 = vunpack.c.l.b16 %v1423
        %v1456 = vunpack.c.l.b16 %v1424
        %v1457 = vunpack.c.l.b16 %v1425
        %v1458 = vunpack.c.l.b16 %v1426
        %v1459 = vunpack.c.l.b16 %v1427
        %v1460 = vunpack.c.l.b16 %v1428
        %v1461 = vunpack.c.l.b16 %v1429
        %v1462 = vunpack.c.l.b16 %v1430
        %v1463 = vunpack.c.l.b16 %v1431
        %v1464 = vunpack.c.l.b16 %v1432
        %v1465 = vunpack.c.l.b16 %v1433
        %v1466 = vunpack.c.l.b16 %v1434
        %v1467 = vpack.c.b16 %v1452, %v1451
        %v1468 = vpack.c.b16 %v1454, %v1453
        %v1469 = vpack.c.b16 %v1456, %v1455
        %v1470 = vpack.c.b16 %v1458, %v1457
        %v1471 = vpack.c.b16 %v1460, %v1459
        %v1472 = vpack.c.b16 %v1462, %v1461
        %v1473 = vpack.c.b16 %v1464, %v1463
        %v1474 = vpack.c.b16 %v1466, %v1465
        %1483 = vmatprep.subr.bf16.mxu0 0
        %1484 = vmatpush1.bf16.msra.mxu0 %v1467
        %1485 = vmatprep.subr.bf16.mxu0 0
        %1486 = vmatpush1.bf16.msra.mxu0 %v1468
        %1487 = vmatprep.subr.bf16.mxu0 0
        %1488 = vmatpush1.bf16.msra.mxu0 %v1469
        %1489 = vmatprep.subr.bf16.mxu0 0
        %1490 = vmatpush1.bf16.msra.mxu0 %v1470
        %1491 = vmatprep.subr.bf16.mxu0 0
        %1492 = vmatpush1.bf16.msra.mxu0 %v1471
        %1493 = vmatprep.subr.bf16.mxu0 0
        %1494 = vmatpush1.bf16.msra.mxu0 %v1472
        %1495 = vmatprep.subr.bf16.mxu0 0
        %1496 = vmatpush1.bf16.msra.mxu0 %v1473
        %1497 = vmatprep.subr.bf16.mxu0 0
        %1498 = vmatpush1.bf16.msra.mxu0 %v1474
        %1499 = vmatprep.subr.bf16.mxu0 0
        %1500 = vmatpush1.bf16.msra.mxu0 0
        %1501 = vmatprep.subr.bf16.mxu0 0
        %1502 = vmatpush1.bf16.msra.mxu0 0
        %1503 = vmatprep.subr.bf16.mxu0 0
        %1504 = vmatpush1.bf16.msra.mxu0 0
        %1505 = vmatprep.subr.bf16.mxu0 0
        %1506 = vmatpush1.bf16.msra.mxu0 0
        %1507 = vmatprep.subr.bf16.mxu0 0
        %1508 = vmatpush1.bf16.msra.mxu0 0
        %1509 = vmatprep.subr.bf16.mxu0 0
        %1510 = vmatpush1.bf16.msra.mxu0 0
        %1511 = vmatprep.subr.bf16.mxu0 0
        %1512 = vmatpush1.bf16.msra.mxu0 0
        %1513 = vmatprep.subr.bf16.mxu0 0
        %1514 = vmatpush1.bf16.msra.mxu0 0
        %1515 = vmatprep.mubr.bf16.mxu0 0
        %1516 = vmatmul.mubr.bf16.gmra.mrb[0].mxu0 %v1371
        %v1517 = vpop.f32.mrb[0].mxu0
        %v1518 = vadd.f32 0.0, %v1517
        %v1519 = vpop.f32.mrb[0].mxu0
        %v1520 = vpop.f32.mrb[0].mxu0
        %v1521 = vadd.f32 0.0, %v1520
        %v1522 = vpop.f32.mrb[0].mxu0
        %1523 = vmatprep.mubr.bf16.mxu0 0
        %1524 = vmatmul.mubr.bf16.gmra.mrb[0].mxu0 %v1372
        %v1525 = vpop.f32.mrb[0].mxu0
        %v1526 = vadd.f32 0.0, %v1525
        %v1527 = vpop.f32.mrb[0].mxu0
        %v1528 = vpop.f32.mrb[0].mxu0
        %v1529 = vadd.f32 0.0, %v1528
        %v1530 = vpop.f32.mrb[0].mxu0
        %1531 = vmatprep.mubr.bf16.mxu0 0
        %1532 = vmatmul.mubr.bf16.gmra.mrb[0].mxu0 %v1373
        %v1533 = vpop.f32.mrb[0].mxu0
        %v1534 = vadd.f32 0.0, %v1533
        %v1535 = vpop.f32.mrb[0].mxu0
        %v1536 = vpop.f32.mrb[0].mxu0
        %v1537 = vadd.f32 0.0, %v1536
        %v1538 = vpop.f32.mrb[0].mxu0
        %1539 = vmatprep.mubr.bf16.mxu0 0
        %1540 = vmatmul.mubr.bf16.gmra.mrb[0].mxu0 %v1374
        %v1541 = vpop.f32.mrb[0].mxu0
        %v1542 = vadd.f32 0.0, %v1541
        %v1543 = vpop.f32.mrb[0].mxu0
        %v1544 = vpop.f32.mrb[0].mxu0
        %v1545 = vadd.f32 0.0, %v1544
        %v1546 = vpop.f32.mrb[0].mxu0
        %1547 = vmatprep.mubr.bf16.mxu0 0
        %1548 = vmatmul.mubr.bf16.gmra.mrb[0].mxu0 %v1375
        %v1549 = vpop.f32.mrb[0].mxu0
        %v1550 = vadd.f32 0.0, %v1549
        %v1551 = vpop.f32.mrb[0].mxu0
        %v1552 = vpop.f32.mrb[0].mxu0
        %v1553 = vadd.f32 0.0, %v1552
        %v1554 = vpop.f32.mrb[0].mxu0
        %1555 = vmatprep.mubr.bf16.mxu0 0
        %1556 = vmatmul.mubr.bf16.gmra.mrb[0].mxu0 %v1376
        %v1557 = vpop.f32.mrb[0].mxu0
        %v1558 = vadd.f32 0.0, %v1557
        %v1559 = vpop.f32.mrb[0].mxu0
        %v1560 = vpop.f32.mrb[0].mxu0
        %v1561 = vadd.f32 0.0, %v1560
        %v1562 = vpop.f32.mrb[0].mxu0
        %1563 = vmatprep.mubr.bf16.mxu0 0
        %1564 = vmatmul.mubr.bf16.gmra.mrb[0].mxu0 %v1377
        %v1565 = vpop.f32.mrb[0].mxu0
        %v1566 = vadd.f32 0.0, %v1565
        %v1567 = vpop.f32.mrb[0].mxu0
        %v1568 = vpop.f32.mrb[0].mxu0
        %v1569 = vadd.f32 0.0, %v1568
        %v1570 = vpop.f32.mrb[0].mxu0
        %1571 = vmatprep.mubr.bf16.mxu0 0
        %1572 = vmatmul.mubr.bf16.gmra.mrb[0].mxu0 %v1378
        %v1573 = vpop.f32.mrb[0].mxu0
        %v1574 = vadd.f32 0.0, %v1573
        %v1575 = vpop.f32.mrb[0].mxu0
        %v1576 = vpop.f32.mrb[0].mxu0
        %v1577 = vadd.f32 0.0, %v1576
        %v1578 = vpop.f32.mrb[0].mxu0
        %1579 = vmatprep.mubr.bf16.mxu0 0
        %1580 = vmatmul.mubr.bf16.gmra.mrb[0].mxu0 %v1379
        %v1581 = vpop.f32.mrb[0].mxu0
        %v1582 = vadd.f32 0.0, %v1581
        %v1583 = vpop.f32.mrb[0].mxu0
        %v1584 = vpop.f32.mrb[0].mxu0
        %v1585 = vadd.f32 0.0, %v1584
        %v1586 = vpop.f32.mrb[0].mxu0
        %1587 = vmatprep.mubr.bf16.mxu0 0
        %1588 = vmatmul.mubr.bf16.gmra.mrb[0].mxu0 %v1380
        %v1589 = vpop.f32.mrb[0].mxu0
        %v1590 = vadd.f32 0.0, %v1589
        %v1591 = vpop.f32.mrb[0].mxu0
        %v1592 = vpop.f32.mrb[0].mxu0
        %v1593 = vadd.f32 0.0, %v1592
        %v1594 = vpop.f32.mrb[0].mxu0
        %1595 = vmatprep.mubr.bf16.mxu0 0
        %1596 = vmatmul.mubr.bf16.gmra.mrb[0].mxu0 %v1381
        %v1597 = vpop.f32.mrb[0].mxu0
        %v1598 = vadd.f32 0.0, %v1597
        %v1599 = vpop.f32.mrb[0].mxu0
        %v1600 = vpop.f32.mrb[0].mxu0
        %v1601 = vadd.f32 0.0, %v1600
        %v1602 = vpop.f32.mrb[0].mxu0
        %1603 = vmatprep.mubr.bf16.mxu0 0
        %1604 = vmatmul.mubr.bf16.gmra.mrb[0].mxu0 %v1382
        %v1605 = vpop.f32.mrb[0].mxu0
        %v1606 = vadd.f32 0.0, %v1605
        %v1607 = vpop.f32.mrb[0].mxu0
        %v1608 = vpop.f32.mrb[0].mxu0
        %v1609 = vadd.f32 0.0, %v1608
        %v1610 = vpop.f32.mrb[0].mxu0
        %1611 = vmatprep.mubr.bf16.mxu0 0
        %1612 = vmatmul.mubr.bf16.gmra.mrb[0].mxu0 %v1383
        %v1613 = vpop.f32.mrb[0].mxu0
        %v1614 = vadd.f32 0.0, %v1613
        %v1615 = vpop.f32.mrb[0].mxu0
        %v1616 = vpop.f32.mrb[0].mxu0
        %v1617 = vadd.f32 0.0, %v1616
        %v1618 = vpop.f32.mrb[0].mxu0
        %1619 = vmatprep.mubr.bf16.mxu0 0
        %1620 = vmatmul.mubr.bf16.gmra.mrb[0].mxu0 %v1384
        %v1621 = vpop.f32.mrb[0].mxu0
        %v1622 = vadd.f32 0.0, %v1621
        %v1623 = vpop.f32.mrb[0].mxu0
        %v1624 = vpop.f32.mrb[0].mxu0
        %v1625 = vadd.f32 0.0, %v1624
        %v1626 = vpop.f32.mrb[0].mxu0
        %1627 = vmatprep.mubr.bf16.mxu0 0
        %1628 = vmatmul.mubr.bf16.gmra.mrb[0].mxu0 %v1385
        %v1629 = vpop.f32.mrb[0].mxu0
        %v1630 = vadd.f32 0.0, %v1629
        %v1631 = vpop.f32.mrb[0].mxu0
        %v1632 = vpop.f32.mrb[0].mxu0
        %v1633 = vadd.f32 0.0, %v1632
        %v1634 = vpop.f32.mrb[0].mxu0
        %1635 = vmatprep.mubr.bf16.mxu0 0
        %1636 = vmatmul.mubr.bf16.gmra.mrb[0].mxu0 %v1386
        %v1637 = vpop.f32.mrb[0].mxu0
        %v1638 = vadd.f32 0.0, %v1637
        %v1639 = vpop.f32.mrb[0].mxu0
        %v1640 = vpop.f32.mrb[0].mxu0
        %v1641 = vadd.f32 0.0, %v1640
        %v1642 = vpop.f32.mrb[0].mxu0
        %1643 = vdwg.mxu0
        %v1644 = vadd.f32 %v1387, %v1518
        %v1645 = vadd.f32 %v1388, %v1521
        %v1646 = vadd.f32 %v1389, %v1526
        %v1647 = vadd.f32 %v1390, %v1529
        %v1648 = vadd.f32 %v1391, %v1534
        %v1649 = vadd.f32 %v1392, %v1537
        %v1650 = vadd.f32 %v1393, %v1542
        %v1651 = vadd.f32 %v1394, %v1545
        %v1652 = vadd.f32 %v1395, %v1550
        %v1653 = vadd.f32 %v1396, %v1553
        %v1654 = vadd.f32 %v1397, %v1558
        %v1655 = vadd.f32 %v1398, %v1561
        %v1656 = vadd.f32 %v1399, %v1566
        %v1657 = vadd.f32 %v1400, %v1569
        %v1658 = vadd.f32 %v1401, %v1574
        %v1659 = vadd.f32 %v1402, %v1577
        %v1660 = vadd.f32 %v1403, %v1582
        %v1661 = vadd.f32 %v1404, %v1585
        %v1662 = vadd.f32 %v1405, %v1590
        %v1663 = vadd.f32 %v1406, %v1593
        %v1664 = vadd.f32 %v1407, %v1598
        %v1665 = vadd.f32 %v1408, %v1601
        %v1666 = vadd.f32 %v1409, %v1606
        %v1667 = vadd.f32 %v1410, %v1609
        %v1668 = vadd.f32 %v1411, %v1614
        %v1669 = vadd.f32 %v1412, %v1617
        %v1670 = vadd.f32 %v1413, %v1622
        %v1671 = vadd.f32 %v1414, %v1625
        %v1672 = vadd.f32 %v1415, %v1630
        %v1673 = vadd.f32 %v1416, %v1633
        %v1674 = vadd.f32 %v1417, %v1638
        %v1675 = vadd.f32 %v1418, %v1641
        %1676 = vst [vmem:[#allocation2] sm:$0xff] %v1644
        %1677 = vst [vmem:[#allocation2 + $0x8] sm:$0xff] %v1645
        %1678 = vst [vmem:[#allocation2 + $0x10] sm:$0xff] %v1646
        %1679 = vst [vmem:[#allocation2 + $0x18] sm:$0xff] %v1647
        %1680 = vst [vmem:[#allocation2 + $0x20] sm:$0xff] %v1648
        %1681 = vst [vmem:[#allocation2 + $0x28] sm:$0xff] %v1649
        %1682 = vst [vmem:[#allocation2 + $0x30] sm:$0xff] %v1650
        %1683 = vst [vmem:[#allocation2 + $0x38] sm:$0xff] %v1651
        %1684 = vst [vmem:[#allocation2 + $0x40] sm:$0xff] %v1652
        %1685 = vst [vmem:[#allocation2 + $0x48] sm:$0xff] %v1653
        %1686 = vst [vmem:[#allocation2 + $0x50] sm:$0xff] %v1654
        %1687 = vst [vmem:[#allocation2 + $0x58] sm:$0xff] %v1655
        %1688 = vst [vmem:[#allocation2 + $0x60] sm:$0xff] %v1656
        %1689 = vst [vmem:[#allocation2 + $0x68] sm:$0xff] %v1657
        %1690 = vst [vmem:[#allocation2 + $0x70] sm:$0xff] %v1658
        %1691 = vst [vmem:[#allocation2 + $0x78] sm:$0xff] %v1659
        %1692 = vst [vmem:[#allocation2 + $0x80] sm:$0xff] %v1660
        %1693 = vst [vmem:[#allocation2 + $0x88] sm:$0xff] %v1661
        %1694 = vst [vmem:[#allocation2 + $0x90] sm:$0xff] %v1662
        %1695 = vst [vmem:[#allocation2 + $0x98] sm:$0xff] %v1663
        %1696 = vst [vmem:[#allocation2 + $0xa0] sm:$0xff] %v1664
        %1697 = vst [vmem:[#allocation2 + $0xa8] sm:$0xff] %v1665
        %1698 = vst [vmem:[#allocation2 + $0xb0] sm:$0xff] %v1666
        %1699 = vst [vmem:[#allocation2 + $0xb8] sm:$0xff] %v1667
        %1700 = vst [vmem:[#allocation2 + $0xc0] sm:$0xff] %v1668
        %1701 = vst [vmem:[#allocation2 + $0xc8] sm:$0xff] %v1669
        %1702 = vst [vmem:[#allocation2 + $0xd0] sm:$0xff] %v1670
        %1703 = vst [vmem:[#allocation2 + $0xd8] sm:$0xff] %v1671
        %1704 = vst [vmem:[#allocation2 + $0xe0] sm:$0xff] %v1672
        %1705 = vst [vmem:[#allocation2 + $0xe8] sm:$0xff] %v1673
        %1706 = vst [vmem:[#allocation2 + $0xf0] sm:$0xff] %v1674
        %1707 = vst [vmem:[#allocation2 + $0xf8] sm:$0xff] %v1675
        %p1708 = scmp.eq.s32.totalorder %s22, 1
        // Predicated region
        $region61: #{tpu_custom_call.1} parent=43 // pred_check
          %p1709 = pneg %p1708
        $region62: #{tpu_custom_call.1} parent=43 // pred_check_branch
          %1711 = sbr.rel (%p1709) target = $region64
        $region63: #{tpu_custom_call.1} parent=43 // pred_region
          %v1712 = vld [vmem:[#allocation2] sm:$0xff]
          %v1713 = vld [vmem:[#allocation2 + $0x8] sm:$0xff]
          %v1714 = vld [vmem:[#allocation2 + $0x10] sm:$0xff]
          %v1715 = vld [vmem:[#allocation2 + $0x18] sm:$0xff]
          %v1716 = vld [vmem:[#allocation2 + $0x20] sm:$0xff]
          %v1717 = vld [vmem:[#allocation2 + $0x28] sm:$0xff]
          %v1718 = vld [vmem:[#allocation2 + $0x30] sm:$0xff]
          %v1719 = vld [vmem:[#allocation2 + $0x38] sm:$0xff]
          %v1720 = vld [vmem:[#allocation2 + $0x40] sm:$0xff]
          %v1721 = vld [vmem:[#allocation2 + $0x48] sm:$0xff]
          %v1722 = vld [vmem:[#allocation2 + $0x50] sm:$0xff]
          %v1723 = vld [vmem:[#allocation2 + $0x58] sm:$0xff]
          %v1724 = vld [vmem:[#allocation2 + $0x60] sm:$0xff]
          %v1725 = vld [vmem:[#allocation2 + $0x68] sm:$0xff]
          %v1726 = vld [vmem:[#allocation2 + $0x70] sm:$0xff]
          %v1727 = vld [vmem:[#allocation2 + $0x78] sm:$0xff]
          %v1728 = vld [vmem:[#allocation2 + $0x80] sm:$0xff]
          %v1729 = vld [vmem:[#allocation2 + $0x88] sm:$0xff]
          %v1730 = vld [vmem:[#allocation2 + $0x90] sm:$0xff]
          %v1731 = vld [vmem:[#allocation2 + $0x98] sm:$0xff]
          %v1732 = vld [vmem:[#allocation2 + $0xa0] sm:$0xff]
          %v1733 = vld [vmem:[#allocation2 + $0xa8] sm:$0xff]
          %v1734 = vld [vmem:[#allocation2 + $0xb0] sm:$0xff]
          %v1735 = vld [vmem:[#allocation2 + $0xb8] sm:$0xff]
          %v1736 = vld [vmem:[#allocation2 + $0xc0] sm:$0xff]
          %v1737 = vld [vmem:[#allocation2 + $0xc8] sm:$0xff]
          %v1738 = vld [vmem:[#allocation2 + $0xd0] sm:$0xff]
          %v1739 = vld [vmem:[#allocation2 + $0xd8] sm:$0xff]
          %v1740 = vld [vmem:[#allocation2 + $0xe0] sm:$0xff]
          %v1741 = vld [vmem:[#allocation2 + $0xe8] sm:$0xff]
          %v1742 = vld [vmem:[#allocation2 + $0xf0] sm:$0xff]
          %v1743 = vld [vmem:[#allocation2 + $0xf8] sm:$0xff]
          %v1744 = vld [vmem:[%s5] sm:$0x1]
          %v1746 = vlaneseq
          %v1747 = vshrl.u32 %v1746, 7
          %v1748 = vsub.s32 0, %v1747
          %v1749 = vrot.slane %v1744, %v1748
          %v1751 = vadd.f32 %v1712, %v1749
          %v1752 = vadd.f32 %v1713, %v1749
          %v1753 = vadd.f32 %v1714, %v1749
          %v1754 = vadd.f32 %v1715, %v1749
          %v1755 = vadd.f32 %v1716, %v1749
          %v1756 = vadd.f32 %v1717, %v1749
          %v1757 = vadd.f32 %v1718, %v1749
          %v1758 = vadd.f32 %v1719, %v1749
          %v1759 = vadd.f32 %v1720, %v1749
          %v1760 = vadd.f32 %v1721, %v1749
          %v1761 = vadd.f32 %v1722, %v1749
          %v1762 = vadd.f32 %v1723, %v1749
          %v1763 = vadd.f32 %v1724, %v1749
          %v1764 = vadd.f32 %v1725, %v1749
          %v1765 = vadd.f32 %v1726, %v1749
          %v1766 = vadd.f32 %v1727, %v1749
          %v1767 = vadd.f32 %v1728, %v1749
          %v1768 = vadd.f32 %v1729, %v1749
          %v1769 = vadd.f32 %v1730, %v1749
          %v1770 = vadd.f32 %v1731, %v1749
          %v1771 = vadd.f32 %v1732, %v1749
          %v1772 = vadd.f32 %v1733, %v1749
          %v1773 = vadd.f32 %v1734, %v1749
          %v1774 = vadd.f32 %v1735, %v1749
          %v1775 = vadd.f32 %v1736, %v1749
          %v1776 = vadd.f32 %v1737, %v1749
          %v1777 = vadd.f32 %v1738, %v1749
          %v1778 = vadd.f32 %v1739, %v1749
          %v1779 = vadd.f32 %v1740, %v1749
          %v1780 = vadd.f32 %v1741, %v1749
          %v1781 = vadd.f32 %v1742, %v1749
          %v1782 = vadd.f32 %v1743, %v1749
          %1783 = vst [vmem:[#allocation9] sm:$0xff] %v1751
          %1784 = vst [vmem:[#allocation9 + $0x8] sm:$0xff] %v1752
          %1785 = vst [vmem:[#allocation9 + $0x10] sm:$0xff] %v1753
          %1786 = vst [vmem:[#allocation9 + $0x18] sm:$0xff] %v1754
          %1787 = vst [vmem:[#allocation9 + $0x20] sm:$0xff] %v1755
          %1788 = vst [vmem:[#allocation9 + $0x28] sm:$0xff] %v1756
          %1789 = vst [vmem:[#allocation9 + $0x30] sm:$0xff] %v1757
          %1790 = vst [vmem:[#allocation9 + $0x38] sm:$0xff] %v1758
          %1791 = vst [vmem:[#allocation9 + $0x40] sm:$0xff] %v1759
          %1792 = vst [vmem:[#allocation9 + $0x48] sm:$0xff] %v1760
          %1793 = vst [vmem:[#allocation9 + $0x50] sm:$0xff] %v1761
          %1794 = vst [vmem:[#allocation9 + $0x58] sm:$0xff] %v1762
          %1795 = vst [vmem:[#allocation9 + $0x60] sm:$0xff] %v1763
          %1796 = vst [vmem:[#allocation9 + $0x68] sm:$0xff] %v1764
          %1797 = vst [vmem:[#allocation9 + $0x70] sm:$0xff] %v1765
          %1798 = vst [vmem:[#allocation9 + $0x78] sm:$0xff] %v1766
          %1799 = vst [vmem:[#allocation9 + $0x80] sm:$0xff] %v1767
          %1800 = vst [vmem:[#allocation9 + $0x88] sm:$0xff] %v1768
          %1801 = vst [vmem:[#allocation9 + $0x90] sm:$0xff] %v1769
          %1802 = vst [vmem:[#allocation9 + $0x98] sm:$0xff] %v1770
          %1803 = vst [vmem:[#allocation9 + $0xa0] sm:$0xff] %v1771
          %1804 = vst [vmem:[#allocation9 + $0xa8] sm:$0xff] %v1772
          %1805 = vst [vmem:[#allocation9 + $0xb0] sm:$0xff] %v1773
          %1806 = vst [vmem:[#allocation9 + $0xb8] sm:$0xff] %v1774
          %1807 = vst [vmem:[#allocation9 + $0xc0] sm:$0xff] %v1775
          %1808 = vst [vmem:[#allocation9 + $0xc8] sm:$0xff] %v1776
          %1809 = vst [vmem:[#allocation9 + $0xd0] sm:$0xff] %v1777
          %1810 = vst [vmem:[#allocation9 + $0xd8] sm:$0xff] %v1778
          %1811 = vst [vmem:[#allocation9 + $0xe0] sm:$0xff] %v1779
          %1812 = vst [vmem:[#allocation9 + $0xe8] sm:$0xff] %v1780
          %1813 = vst [vmem:[#allocation9 + $0xf0] sm:$0xff] %v1781
          %1814 = vst [vmem:[#allocation9 + $0xf8] sm:$0xff] %v1782
        $region64: #{tpu_custom_call.1} parent=43 // pred_fallthru
          _
        // Predicated region
        $region65: #{tpu_custom_call.1} parent=43 // pred_check
          %p1815 = pneg %p181
        $region66: #{tpu_custom_call.1} parent=43 // pred_check_branch
          %1817 = sbr.rel (%p1815) target = $region68
        $region67: #{tpu_custom_call.1} parent=43 // pred_region
          %s1819 = ssub.s32 4096, 4096
          %1820 = vsyncadd [#allocation5], %s1819
          %s1821 = sshll.u32 [#allocation9], 4
          %s1822 = int_to_ptr.vmem [resolvable:$true] %s1821
          %1827 = dma.vmem_to_hbm [thread:$0]  %s1822, 4096, %s6, [#allocation5], 128, 128, 8
        $region68: #{tpu_custom_call.1} parent=43 // pred_fallthru
          _
        // Predicated region
        $region69: #{tpu_custom_call.1} parent=43 // pred_check
          %p1828 = pneg %p181
        $region70: #{tpu_custom_call.1} parent=43 // pred_check_branch
          %1830 = sbr.rel (%p1828) target = $region72
        $region71: #{tpu_custom_call.1} parent=43 // pred_region
          %1831 = dma.done [#allocation5], 4096
        $region72: #{tpu_custom_call.1} parent=43 // pred_fallthru
          _
      $region44: #{tpu_custom_call.1} parent=5 // pred_fallthru
        _
      %p1832 = scmp.le.s32.totalorder 2, %s17
      // Predicated region
      $region73: #{tpu_custom_call.1} parent=5 // pred_check
        %p1833 = pneg %p1832
      $region74: #{tpu_custom_call.1} parent=5 // pred_check_branch
        %1835 = sbr.rel (%p1833) target = $region76
      $region75: #{tpu_custom_call.1} parent=5 // pred_region
        %s1836 = ssub.s32 %s17, 2
      $region76: #{tpu_custom_call.1} parent=5 // pred_fallthru
        _
    $region6: #{tpu_custom_call.1} parent=1 // loop_footer
      %s21 = sadd.s32 1, %s17
    $region7: #{tpu_custom_call.1} parent=1 // loop_footer_branch
      %16 = sbr.rel target = $region3
    $region8: #{tpu_custom_call.1} parent=1 // loop_exit
      _
    %1837 = vsyncpa [#allocation4], 1
    %s1838 = scalar_lea.sflag [#allocation4], 1
    %1839 = vsyncpa %s1838, 1
    %1840 = vsyncpa [#allocation7], 1
    %s1841 = scalar_lea.sflag [#allocation7], 1
    %1842 = vsyncpa %s1841, 1
    %1843 = vsyncpa [#allocation5], 1
    %s1844 = scalar_lea.sflag [#allocation5], 1
    %1845 = vsyncpa %s1844, 1

</llo_original>
